<compile_context>
chip_gen: v5e
topology: v5e:2x2
jax: 0.10.0
libtpu: 0.0.40
codegen_flags: <defaults>
</compile_context>

<pallas_src>
import functools
import math

import jax
import jax.numpy as jnp
from jax.experimental import pallas as pl
from jax.experimental.pallas import tpu as pltpu

CFG_A = [64, 'M', 128, 'M', 256, 256, 'M', 512, 512, 'M', 512, 512, 'M']

_MXU_DTYPE = jnp.bfloat16   # MXU-native operand dtype; accumulation stays f32.


def _round_up(x, m):
    return ((x + m - 1) // m) * m


@functools.lru_cache(maxsize=None)
def _vmem_limit_bytes():
    """Generation-aware scoped-VMEM limit (v7x: 64 MiB/TC, v5e/v6e: 128 MiB)."""
    try:
        cap = int(pltpu.get_tpu_info().vmem_capacity_bytes)
    except Exception:
        cap = 64 * 1024 * 1024
    return min(cap * 3 // 4, 96 * 1024 * 1024)


# ----------------------------------------------------------------------------
# Generic matmul + bias (+ optional ReLU) kernel (used by the classifier + conv1)
# ----------------------------------------------------------------------------
def _matmul_bias_kernel(x_ref, w_ref, b_ref, o_ref, acc_ref, *, relu):
    @pl.when(pl.program_id(2) == 0)
    def _():
        acc_ref[...] = jnp.zeros_like(acc_ref)

    acc_ref[...] += jnp.dot(x_ref[...], w_ref[...],
                            preferred_element_type=jnp.float32)

    @pl.when(pl.program_id(2) == pl.num_programs(2) - 1)
    def _():
        y = acc_ref[...] + b_ref[...]          # f32 epilogue on the f32 accumulator
        if relu:
            y = jnp.maximum(y, 0.0)
        o_ref[...] = y.astype(o_ref.dtype)


def _pick_tile(dim, max_tile, align):
    """Largest tile <= max_tile dividing `dim` and multiple of `align`, else full dim."""
    if dim <= max_tile:
        return dim
    t = (max_tile // align) * align
    while t >= align:
        if dim % t == 0:
            return t
        t -= align
    return dim


def matmul_bias(x, w, b, *, relu, out_dtype=None):
    """x: (M,K) bf16, w: (K,N) bf16, b: (N,) f32 -> relu?(x @ w + b)."""
    M, K = x.shape
    K2, N = w.shape
    assert K == K2
    out_dtype = out_dtype or x.dtype
    tm = _pick_tile(M, 512, 8)
    tn = _pick_tile(N, 512, 128)
    tk = _pick_tile(K, 1024, 128)
    b2 = b.reshape(1, N).astype(jnp.float32)

    kernel = functools.partial(_matmul_bias_kernel, relu=relu)
    return pl.pallas_call(
        kernel,
        out_shape=jax.ShapeDtypeStruct((M, N), out_dtype),
        grid_spec=pltpu.PrefetchScalarGridSpec(
            num_scalar_prefetch=0,
            grid=(M // tm, N // tn, K // tk),
            in_specs=[
                pl.BlockSpec((tm, tk), lambda i, j, k: (i, k)),
                pl.BlockSpec((tk, tn), lambda i, j, k: (k, j)),
                pl.BlockSpec((1, tn), lambda i, j, k: (0, j)),
            ],
            out_specs=pl.BlockSpec((tm, tn), lambda i, j, k: (i, j)),
            scratch_shapes=[pltpu.VMEM((tm, tn), jnp.float32)],
        ),
        compiler_params=pltpu.CompilerParams(
            dimension_semantics=("parallel", "parallel", "arbitrary"),
            vmem_limit_bytes=_vmem_limit_bytes(),
        ),
    )(x, w, b2)


# ----------------------------------------------------------------------------
# Fused Conv3x3 (pad=1, stride=1) + bias + ReLU
#   implicit im2col: manual halo DMA builds a (span, 3*Cin) kw-im2col patch in VMEM
# ----------------------------------------------------------------------------
def _conv3x3_kernel(x_hbm, w_ref, b_ref, o_ref, patch, sem,
                    *, rows, width, wp8, cin, cout, n_dma):
    """One grid step: compute `rows` output rows of one image.

    patch[slot] holds the kw-im2col of a halo row-block: column block d (lane width
    `cin`) is the flattened (width padded to wp8, multiple of 8) input shifted by d
    pixels.  n_dma == 3: the three shifted copies are written by three DMAs into
    lane-tile-aligned column blocks.  n_dma == 1: the concatenation was prebuilt in
    XLA (cin == 3*Cin_actual; used when Cin < 128).
    """
    span = (rows + 2) * wp8          # patch rows: covers the kh = 0/1/2 windows below
    Lp = rows * wp8                  # accumulator rows (row-block * padded width)

    n = pl.program_id(0)
    rb = pl.program_id(1)
    num_rb = pl.num_programs(1)
    slot = rb % 2

    def halo_copies(img, blk, sl):
        base = blk * (rows * wp8)
        return [pltpu.make_async_copy(
                    x_hbm.at[img, pl.ds(base + d, span), :],
                    patch.at[sl, :, pl.ds(d * cin, cin)],
                    sem.at[sl, d])
                for d in range(n_dma)]

    # Prime the pipeline at the first row-block of each image.
    @pl.when(rb == 0)
    def _():
        for c in halo_copies(n, 0, slot):
            c.start()

    # Prefetch the next row-block of the same image while this one is computed.
    @pl.when(rb + 1 < num_rb)
    def _():
        for c in halo_copies(n, rb + 1, 1 - slot):
            c.start()

    for c in halo_copies(n, rb, slot):
        c.wait()

    # Three MXU matmuls with K = 3*Cin, one per kh.  The kh offsets {0, wp8, 2*wp8}
    # are sublane-aligned (wp8 % 8 == 0), so no relayouts; only 2 accumulator adds.
    acc = jnp.dot(patch[slot, pl.ds(0, Lp), :], w_ref[0],
                  preferred_element_type=jnp.float32)
    acc = acc + jnp.dot(patch[slot, pl.ds(wp8, Lp), :], w_ref[1],
                        preferred_element_type=jnp.float32)
    acc = acc + jnp.dot(patch[slot, pl.ds(2 * wp8, Lp), :], w_ref[2],
                        preferred_element_type=jnp.float32)

    # Bias + ReLU in f32, then a single block store (free reshape since wp8 % 8 == 0);
    # the seam / alignment-pad columns are sliced away.
    y = jnp.maximum(acc + b_ref[...], 0.0).astype(o_ref.dtype)
    o_ref[0, :, :, :] = y.reshape(rows, wp8, cout)[:, :width, :]


def _pick_conv_rows(H, W, wp8, patch_lanes, cout, budget, acc_cap=4 * 1024 * 1024):
    """Largest row-block dividing H that fits the VMEM budget (and a soft acc cap)."""
    best = 1
    for tr in range(1, min(H, 256) + 1):
        if H % tr:
            continue
        span = (tr + 2) * wp8
        Lp = tr * wp8
        if Lp * cout * 4 > acc_cap:
            continue
        need = (2 * span * patch_lanes * 2          # double-buffered bf16 kw-im2col patch
                + 3 * Lp * cout * 4                 # f32 dot results / accumulator copies
                + Lp * cout * 2                     # bf16 epilogue copy
                + 2 * tr * W * cout * 2             # double-buffered bf16 output block
                + 2 * 3 * patch_lanes * cout * 2)   # double-buffered resident weights
        if need <= budget:
            best = tr
    return best


def conv3x3_relu(x, w, b):
    """x: (N,H,W,Cin) bf16 NHWC, w: (3,3,Cin,Cout) bf16 HWIO, b: (Cout,) f32."""
    N, H, W, Cin = x.shape
    Cout = w.shape[-1]

    if Cin < 16:
        # First layer (Cin=3): im2col expansion is only 9*3=27 columns -> negligible HBM
        # traffic; reuse the tiled matmul kernel.
        xp = jnp.pad(x, ((0, 0), (1, 1), (1, 1), (0, 0)))
        cols = [xp[:, kh:kh + H, kw:kw + W, :] for kh in range(3) for kw in range(3)]
        patches = jnp.concatenate(cols, axis=-1).reshape(N * H * W, 9 * Cin)
        y = matmul_bias(patches, w.reshape(9 * Cin, Cout), b, relu=True)
        return y.reshape(N, H, W, Cout)

    wp8 = _round_up(W + 2, 8)        # padded row width -> sublane-aligned kh tap offsets
    patch_lanes = 3 * Cin

    if Cin % 128 == 0:
        # kw-im2col built by the DMA engine: 3 shifted copies land in lane-tile-aligned
        # column blocks of the patch scratch.  Pad: 1 top row, 2 bottom rows (the second
        # keeps the kw=+2 shifted copy of the last row-block in bounds), width -> wp8.
        xp = jnp.pad(x, ((0, 0), (1, 2), (1, wp8 - W - 1), (0, 0)))
        xflat = xp.reshape(N, (H + 3) * wp8, Cin)             # free reshape (contiguous)
        n_dma, copy_lanes = 3, Cin
    else:
        # Cin == 64 (conv2 only): a 64-lane DMA destination offset is not tile-aligned,
        # so prebuild the 3-wide kw concatenation in XLA and DMA one aligned copy/block.
        xp = jnp.pad(x, ((0, 0), (1, 2), (1, wp8 - W + 1), (0, 0)))
        xcat = jnp.concatenate([xp[:, :, kw:kw + wp8, :] for kw in range(3)], axis=-1)
        xflat = xcat.reshape(N, (H + 3) * wp8, patch_lanes)
        n_dma, copy_lanes = 1, patch_lanes

    w9 = w.reshape(3, 3 * Cin, Cout)     # (kh, kw*Cin, Cout): matches patch lane order
    b2 = b.reshape(1, Cout).astype(jnp.float32)

    vmem_limit = _vmem_limit_bytes()
    rows = _pick_conv_rows(H, W, wp8, patch_lanes, Cout, budget=vmem_limit // 2)
    num_rb = H // rows
    span = (rows + 2) * wp8

    kernel = functools.partial(_conv3x3_kernel, rows=rows, width=W, wp8=wp8,
                               cin=copy_lanes, cout=Cout, n_dma=n_dma)
    return pl.pallas_call(
        kernel,
        out_shape=jax.ShapeDtypeStruct((N, H, W, Cout), x.dtype),
        grid_spec=pltpu.PrefetchScalarGridSpec(
            num_scalar_prefetch=0,
            grid=(N, num_rb),
            in_specs=[
                pl.BlockSpec(memory_space=pl.ANY),                          # activation (HBM)
                pl.BlockSpec((3, 3 * Cin, Cout), lambda n, r: (0, 0, 0)),   # weights (resident)
                pl.BlockSpec((1, Cout), lambda n, r: (0, 0)),               # bias
            ],
            out_specs=pl.BlockSpec((1, rows, W, Cout), lambda n, r: (n, r, 0, 0)),
            scratch_shapes=[
                pltpu.VMEM((2, span, patch_lanes), x.dtype),   # double-buffered kw-im2col patch
                pltpu.SemaphoreType.DMA((2, n_dma)),
            ],
        ),
        compiler_params=pltpu.CompilerParams(
            dimension_semantics=("parallel", "arbitrary"),
            vmem_limit_bytes=vmem_limit,
        ),
    )(xflat, w9, b2)


# ----------------------------------------------------------------------------
# MaxPool2d(kernel=2, stride=2)  (gridded; 2x2 reduction done in VMEM)
# ----------------------------------------------------------------------------
def _maxpool_kernel(x_ref, o_ref, *, c):
    v = x_ref[...]                                    # (1, trh, 2, Wo, 2C)
    m = jnp.maximum(v[0, :, 0], v[0, :, 1])           # vertical pair max -> (trh, Wo, 2C)
    o_ref[0, :, :, :] = jnp.maximum(m[..., :c], m[..., c:])   # horizontal pair max


def _pick_pool_rows(Ho, Wo, C, budget):
    best = 1
    for t in range(1, min(Ho, 512) + 1):
        if Ho % t:
            continue
        in_b = 2 * t * 2 * Wo * 2 * C * 2
        out_b = 2 * t * Wo * C * 2
        if in_b + out_b <= budget:
            best = t
    return best


def maxpool2(x):
    N, H, W, C = x.shape
    Ho, Wo = H // 2, W // 2
    xr = x.reshape(N, Ho, 2, Wo, 2 * C)               # free reshape (contiguous)
    trh = _pick_pool_rows(Ho, Wo, C, budget=_vmem_limit_bytes() // 4)
    kernel = functools.partial(_maxpool_kernel, c=C)
    return pl.pallas_call(
        kernel,
        out_shape=jax.ShapeDtypeStruct((N, Ho, Wo, C), x.dtype),
        grid_spec=pltpu.PrefetchScalarGridSpec(
            num_scalar_prefetch=0,
            grid=(N, Ho // trh),
            in_specs=[pl.BlockSpec((1, trh, 2, Wo, 2 * C), lambda n, r: (n, r, 0, 0, 0))],
            out_specs=pl.BlockSpec((1, trh, Wo, C), lambda n, r: (n, r, 0, 0)),
        ),
        compiler_params=pltpu.CompilerParams(
            dimension_semantics=("parallel", "parallel"),
            vmem_limit_bytes=_vmem_limit_bytes(),
        ),
    )(xr)


# ----------------------------------------------------------------------------
# AdaptiveAvgPool2d((7,7))
# ----------------------------------------------------------------------------
def _adaptive_avgpool_kernel(x_ref, o_ref, *, hin, win, hout, wout):
    x = x_ref[0].astype(jnp.float32)                  # (Hin, Win, C)
    for i in range(hout):
        hs = (i * hin) // hout
        he = -((-(i + 1) * hin) // hout)
        cols = []
        for j in range(wout):
            ws = (j * win) // wout
            we = -((-(j + 1) * win) // wout)
            m = jnp.mean(x[hs:he, ws:we, :], axis=(0, 1), keepdims=True)   # (1,1,C)
            cols.append(m[0])                                              # (1,C)
        row = jnp.concatenate(cols, axis=0)                                # (wout, C)
        o_ref[0, i, :, :] = row.astype(o_ref.dtype)


def adaptive_avgpool(x, out_hw=(7, 7)):
    N, Hf, Wf, C = x.shape
    OH, OW = out_hw
    if (Hf, Wf) == (OH, OW):
        return x                                     # standard 224-input path: no-op
    if Hf % OH == 0 and Wf % OW == 0:
        xr = x.reshape(N, OH, Hf // OH, OW, Wf // OW, C).astype(jnp.float32)
        return jnp.mean(xr, axis=(2, 4)).astype(x.dtype)
    kernel = functools.partial(_adaptive_avgpool_kernel, hin=Hf, win=Wf, hout=OH, wout=OW)
    return pl.pallas_call(
        kernel,
        out_shape=jax.ShapeDtypeStruct((N, OH, OW, C), x.dtype),
        grid=(N,),
        in_specs=[pl.BlockSpec((1, Hf, Wf, C), lambda n: (n, 0, 0, 0))],
        out_specs=pl.BlockSpec((1, OH, OW, C), lambda n: (n, 0, 0, 0)),
        compiler_params=pltpu.CompilerParams(
            dimension_semantics=("parallel",),
            vmem_limit_bytes=_vmem_limit_bytes(),
        ),
    )(x)


# ----------------------------------------------------------------------------
# Parameter init (mirrors the PyTorch init scheme; weights stored in bf16)
# ----------------------------------------------------------------------------
def init_vgg_params(key, cfg, n_classes):
    feature = []
    in_c = 3
    for v in cfg:
        if v == 'M':
            feature.append('M')
        else:
            key, k1 = jax.random.split(key)
            fan_out = v * 3 * 3                       # kaiming_normal_, mode='fan_out', relu
            std = math.sqrt(2.0 / fan_out)
            w = (jax.random.normal(k1, (3, 3, in_c, v), jnp.float32) * std).astype(_MXU_DTYPE)
            b = jnp.zeros((v,), jnp.float32)
            feature.append((w, b))
            in_c = v

    # fc1 consumes the NHWC (h, w, c) flatten order directly; this is a one-time row
    # permutation of an equivalently initialized PyTorch fc1 weight (no runtime transpose).
    fc_dims = [(7 * 7 * 512, 4096), (4096, 4096), (4096, n_classes)]
    classifier = []
    for din, dout in fc_dims:
        key, k1 = jax.random.split(key)
        w = (jax.random.normal(k1, (din, dout), jnp.float32) * 0.01).astype(_MXU_DTYPE)
        b = jnp.zeros((dout,), jnp.float32)
        classifier.append((w, b))
    return feature, classifier


# ----------------------------------------------------------------------------
# Forward pass (mirrors VGGNet.forward)
# ----------------------------------------------------------------------------
def vggnet_forward(params, x_nchw):
    feature, classifier = params
    x = jnp.transpose(x_nchw, (0, 2, 3, 1)).astype(_MXU_DTYPE)   # NCHW -> NHWC, bf16

    # self.feature(x): [Conv3x3(pad=1) + ReLU] / MaxPool2d(2) sequence
    for layer in feature:
        if isinstance(layer, str):       # 'M'
            x = maxpool2(x)
        else:
            w, b = layer
            x = conv3x3_relu(x, w, b)

    # self.adpavgpool(x): AdaptiveAvgPool2d((7,7))
    x = adaptive_avgpool(x, (7, 7))

    # torch.flatten(x, 1): NHWC flatten; fc1 weight is defined in this order.
    N = x.shape[0]
    x = x.reshape(N, -1)                 # (N, 7*7*512)

    # self.classifier(x): Linear-ReLU-Dropout-Linear-ReLU-Dropout-Linear
    (w1, b1), (w2, b2), (w3, b3) = classifier
    x = matmul_bias(x, w1, b1, relu=True)                         # Dropout -> identity (eval)
    x = matmul_bias(x, w2, b2, relu=True)                         # Dropout -> identity (eval)

    # Pad the final projection to a lane-dense 128-column output, slice the logits after.
    n_cls = w3.shape[1]
    if n_cls % 128 != 0:
        npad = _round_up(n_cls, 128) - n_cls
        w3p = jnp.pad(w3, ((0, 0), (0, npad)))
        b3p = jnp.pad(b3, ((0, npad),))
        x = matmul_bias(x, w3p, b3p, relu=False, out_dtype=jnp.float32)[:, :n_cls]
    else:
        x = matmul_bias(x, w3, b3, relu=False, out_dtype=jnp.float32)
    return x


if __name__ == "__main__":
    key = jax.random.PRNGKey(0)
    key_p, key_x = jax.random.split(key)

    n_classes = 10  # __init__ arg; kept small for the smoke test
    params = init_vgg_params(key_p, CFG_A, n_classes)

    # Smallest valid spatial size surviving 5 MaxPool2d(2) stages is 32.
    x = jax.random.normal(key_x, (2, 3, 32, 32), jnp.float32)  # NCHW like PyTorch

    out = vggnet_forward(params, x)
    out = jax.block_until_ready(out)

    assert out.shape == (2, n_classes), out.shape
    assert bool(jnp.all(jnp.isfinite(out)))
    print("KERNEL_OK")
</pallas_src>

<mosaic_0001>
module attributes {stable_mosaic.version = 11 : i64} {
  func.func @_matmul_bias_kernel(%arg0: i32, %arg1: i32, %arg2: i32, %arg3: memref<512x27xbf16, #tpu.memory_space<vmem>>, %arg4: memref<27x64xbf16, #tpu.memory_space<vmem>>, %arg5: memref<1x64xf32, #tpu.memory_space<vmem>>, %arg6: memref<512x64xbf16, #tpu.memory_space<vmem>>, %arg7: memref<512x64xf32, #tpu.memory_space<vmem>>) attributes {dimension_semantics = [#tpu.dimension_semantics<parallel>, #tpu.dimension_semantics<parallel>, #tpu.dimension_semantics<arbitrary>], iteration_bounds = array<i64: 4, 1, 1>, scalar_prefetch = 0 : i64, scratch_operands = 1 : i64, tpu.core_type = #tpu.core_type<tc>, window_params = [{transform_indices = @transform_0, window_bounds = array<i64: 512, 27>}, {transform_indices = @transform_1, window_bounds = array<i64: 27, 64>}, {transform_indices = @transform_2, window_bounds = array<i64: 1, 64>}, {transform_indices = @transform_3, window_bounds = array<i64: 512, 64>}]} {
    %c0_i32 = arith.constant 0 : i32
    %0 = arith.cmpi eq, %arg2, %c0_i32 : i32
    %1 = arith.extui %0 : i1 to i32
    %c0_i32_0 = arith.constant 0 : i32
    %2 = arith.cmpi ne, %1, %c0_i32_0 : i32
    scf.if %2 {
      %cst_10 = arith.constant 0.000000e+00 : f32
      %12 = vector.broadcast %cst_10 : f32 to vector<512x64xf32>
      %c0_11 = arith.constant 0 : index
      %c0_12 = arith.constant 0 : index
      %13 = vector.load %arg7[%c0_11, %c0_12] : memref<512x64xf32, #tpu.memory_space<vmem>>, vector<512x64xf32>
      tpu.vector_store %arg7[%c0_11, %c0_12], %12 {strides = array<i32>} : memref<512x64xf32, #tpu.memory_space<vmem>>, vector<512x64xf32>,
    } else {
    }
    %c0 = arith.constant 0 : index
    %c0_1 = arith.constant 0 : index
    %3 = vector.load %arg7[%c0, %c0_1] : memref<512x64xf32, #tpu.memory_space<vmem>>, vector<512x64xf32>
    %c0_2 = arith.constant 0 : index
    %c0_3 = arith.constant 0 : index
    %4 = vector.load %arg3[%c0_2, %c0_3] : memref<512x27xbf16, #tpu.memory_space<vmem>>, vector<512x27xbf16>
    %c0_4 = arith.constant 0 : index
    %c0_5 = arith.constant 0 : index
    %5 = vector.load %arg4[%c0_4, %c0_5] : memref<27x64xbf16, #tpu.memory_space<vmem>>, vector<27x64xbf16>
    %cst = arith.constant dense<0.000000e+00> : vector<512x64xf32>
    %6 = tpu.matmul %4, %5, %cst {dimension_numbers = #tpu.dot_dimension_numbers<[1], [0], [0], [1], [0, 0, 1, 1], [], []>} : vector<512x27xbf16>, vector<27x64xbf16>, vector<512x64xf32> -> vector<512x64xf32>
    %7 = arith.addf %3, %6 : vector<512x64xf32>
    %c0_6 = arith.constant 0 : index
    %c0_7 = arith.constant 0 : index
    %8 = vector.load %arg7[%c0_6, %c0_7] : memref<512x64xf32, #tpu.memory_space<vmem>>, vector<512x64xf32>
    tpu.vector_store %arg7[%c0_6, %c0_7], %7 {strides = array<i32>} : memref<512x64xf32, #tpu.memory_space<vmem>>, vector<512x64xf32>,
    %c0_i32_8 = arith.constant 0 : i32
    %9 = arith.cmpi eq, %arg2, %c0_i32_8 : i32
    %10 = arith.extui %9 : i1 to i32
    %c0_i32_9 = arith.constant 0 : i32
    %11 = arith.cmpi ne, %10, %c0_i32_9 : i32
    scf.if %11 {
      %c0_10 = arith.constant 0 : index
      %c0_11 = arith.constant 0 : index
      %12 = vector.load %arg7[%c0_10, %c0_11] : memref<512x64xf32, #tpu.memory_space<vmem>>, vector<512x64xf32>
      %c0_12 = arith.constant 0 : index
      %c0_13 = arith.constant 0 : index
      %13 = vector.load %arg5[%c0_12, %c0_13] : memref<1x64xf32, #tpu.memory_space<vmem>>, vector<1x64xf32>
      %14 = vector.broadcast %13 : vector<1x64xf32> to vector<512x64xf32>
      %15 = arith.addf %12, %14 : vector<512x64xf32>
      %cst_14 = arith.constant 0.000000e+00 : f32
      %16 = vector.broadcast %cst_14 : f32 to vector<512x64xf32>
      %17 = arith.maximumf %15, %16 : vector<512x64xf32>
      %18 = arith.truncf %17 : vector<512x64xf32> to vector<512x64xbf16>
      %c0_15 = arith.constant 0 : index
      %c0_16 = arith.constant 0 : index
      %19 = vector.load %arg6[%c0_15, %c0_16] : memref<512x64xbf16, #tpu.memory_space<vmem>>, vector<512x64xbf16>
      tpu.vector_store %arg6[%c0_15, %c0_16], %18 {strides = array<i32>} : memref<512x64xbf16, #tpu.memory_space<vmem>>, vector<512x64xbf16>,
    } else {
    }
    return
  }
  func.func @transform_0(%arg0: i32, %arg1: i32, %arg2: i32) -> (i32, i32) {
    %c0_i32 = arith.constant 0 : i32
    return %arg0, %arg2 : i32, i32
  }
  func.func @transform_1(%arg0: i32, %arg1: i32, %arg2: i32) -> (i32, i32) {
    %c0_i32 = arith.constant 0 : i32
    return %arg2, %arg1 : i32, i32
  }
  func.func @transform_2(%arg0: i32, %arg1: i32, %arg2: i32) -> (i32, i32) {
    %c0_i32 = arith.constant 0 : i32
    %c0_i32_0 = arith.constant 0 : i32
    return %c0_i32, %arg1 : i32, i32
  }
  func.func @transform_3(%arg0: i32, %arg1: i32, %arg2: i32) -> (i32, i32) {
    %c0_i32 = arith.constant 0 : i32
    return %arg0, %arg1 : i32, i32
  }
}

</mosaic_0001>

<llo_original>
// kernel: tpu_custom_call.1
$region0: #{tpu_custom_call.1}
  #allocation0 [shape = 'u32[]', space=smem, size = 0x4, offset = 0x4, fixed_abs, tag = 'smem constant byte address 0x4 - core index']
  #allocation1 [shape = 'u32[72,128]{1,0:T(1,128)}', space=vmem, size = 0x9000, scoped, tag = 'internal scratch']
  #allocation2 [shape = 'f32[512,64]{1,0:T(8,128)}', space=vmem, size = 0x40000, scoped, tag = 'scratch operand']
  %s0 = inlined_call_operand.vmem [shape: bf16[2048,27], index: 0, kind: input, shape index: {}]
  %s1 = inlined_call_operand.vmem [shape: bf16[27,64], index: 1, kind: input, shape index: {}]
  %s2 = inlined_call_operand.vmem [shape: f32[1,64], index: 2, kind: input, shape index: {}]
  %s3 = inlined_call_operand.vmem [shape: bf16[2048,64], index: 3, kind: output, shape index: {}]
  %s4 = sld [smem:[#allocation0]]
  $region53: #{tpu_custom_call.1} parent=0
    _
  %s6 = ssub.s32 1, %s4
  %s7 = scalar_select 0, %s6, %s4
  loop: start=0, step=1, limit=6
  $region2: #{tpu_custom_call.1} parent=0 // loop_pre_header
    _
  $region3: #{tpu_custom_call.1} parent=0 // loop_header
    %s9 = sphi 0, %s13
    %p10 = scmp.ge.s32.totalorder %s9, 6
    %s16 = sphi 0, %s35
    %s17 = sphi 0, %s31
    %s18 = sphi 0, %s27
    %s19 = sphi 0, %s16
    %s20 = sphi 0, %s17
    %s21 = sphi 0, %s18
    %s22 = sphi 0, %s19
    %s23 = sphi 0, %s20
    %s24 = sphi 0, %s21
    %s40 = sphi 0, %s42
    %s43 = sphi 0, %s40
    %s44 = sphi 0, %s43
    %s60 = sphi 0, %s44
    %s68 = sphi 0, %s70
    %s71 = sphi 0, %s68
    %s72 = sphi 0, %s71
    %s88 = sphi 0, %s72
    %s94 = sphi 0, %s96
    %s97 = sphi 0, %s94
    %s98 = sphi 0, %s97
    %s114 = sphi 0, %s98
    %s122 = sphi 0, %s124
    %s125 = sphi 0, %s122
    %s126 = sphi 0, %s125
    %s142 = sphi 0, %s126
  $region4: #{tpu_custom_call.1} parent=0 // loop_header_branch
    %12 = sbr.rel (%p10) target = $region8
  $region5: #{tpu_custom_call.1} parent=0 // loop_body
    %s14 = ssub.s32 %s9, 1
    %s15 = ssub.s32 %s9, 2
    %s25 = sadd.s32 1, %s18
    %p26 = scmp.ge.s32.totalorder %s25, 1
    %s27 = scalar_select %p26, 0, %s25
    %s28 = sadd.s32 1, %s17
    %s29 = scalar_select %p26, %s28, %s17
    %p30 = scmp.ge.s32.totalorder %s29, 1
    %s31 = scalar_select %p30, 0, %s29
    %s32 = sadd.s32 1, %s16
    %s33 = scalar_select %p30, %s32, %s16
    %p34 = scmp.ge.s32.totalorder %s33, 4
    %s35 = scalar_select %p34, 0, %s33
    %s36 = ssub.s32 %s16, %s35
    %s37 = ssub.s32 %s18, %s27
    %s38 = sor.u32 %s36, %s37
    %p39 = scmp.eq.s32.totalorder %s38, 0
    %s41 = sadd.s32 %s40, 1
    %s42 = scalar_select %p39, %s40, %s41
    %p45 = pneg %p39
    %p46 = scmp.eq.s32.totalorder %s9, 3
    %p47 = por %p45, %p46
    %p48 = scmp.ne.s32.totalorder %s40, %s43
    %p49 = scmp.eq.s32.totalorder %s9, 0
    %p50 = por %p48, %p49
    %p51 = scmp.ne.s32.totalorder %s40, %s43
    %p52 = scmp.eq.s32.totalorder %s14, 3
    %p53 = por %p51, %p52
    %p54 = scmp.ne.s32.totalorder %s43, %s44
    %p55 = scmp.eq.s32.totalorder %s14, 0
    %p56 = por %p54, %p55
    %p57 = scmp.ne.s32.totalorder %s43, %s44
    %p58 = scmp.eq.s32.totalorder %s15, 3
    %p59 = por %p57, %p58
    %p61 = scmp.ne.s32.totalorder %s44, %s60
    %p62 = scmp.eq.s32.totalorder %s15, 0
    %p63 = por %p61, %p62
    %s64 = ssub.s32 %s18, %s27
    %s65 = ssub.s32 %s17, %s31
    %s66 = sor.u32 %s64, %s65
    %p67 = scmp.eq.s32.totalorder %s66, 0
    %s69 = sadd.s32 %s68, 1
    %s70 = scalar_select %p67, %s68, %s69
    %p73 = pneg %p67
    %p74 = scmp.eq.s32.totalorder %s9, 3
    %p75 = por %p73, %p74
    %p76 = scmp.ne.s32.totalorder %s68, %s71
    %p77 = scmp.eq.s32.totalorder %s9, 0
    %p78 = por %p76, %p77
    %p79 = scmp.ne.s32.totalorder %s68, %s71
    %p80 = scmp.eq.s32.totalorder %s14, 3
    %p81 = por %p79, %p80
    %p82 = scmp.ne.s32.totalorder %s71, %s72
    %p83 = scmp.eq.s32.totalorder %s14, 0
    %p84 = por %p82, %p83
    %p85 = scmp.ne.s32.totalorder %s71, %s72
    %p86 = scmp.eq.s32.totalorder %s15, 3
    %p87 = por %p85, %p86
    %p89 = scmp.ne.s32.totalorder %s72, %s88
    %p90 = scmp.eq.s32.totalorder %s15, 0
    %p91 = por %p89, %p90
    %s92 = ssub.s32 %s17, %s31
    %p93 = scmp.eq.s32.totalorder %s92, 0
    %s95 = sadd.s32 %s94, 1
    %s96 = scalar_select %p93, %s94, %s95
    %p99 = pneg %p93
    %p100 = scmp.eq.s32.totalorder %s9, 3
    %p101 = por %p99, %p100
    %p102 = scmp.ne.s32.totalorder %s94, %s97
    %p103 = scmp.eq.s32.totalorder %s9, 0
    %p104 = por %p102, %p103
    %p105 = scmp.ne.s32.totalorder %s94, %s97
    %p106 = scmp.eq.s32.totalorder %s14, 3
    %p107 = por %p105, %p106
    %p108 = scmp.ne.s32.totalorder %s97, %s98
    %p109 = scmp.eq.s32.totalorder %s14, 0
    %p110 = por %p108, %p109
    %p111 = scmp.ne.s32.totalorder %s97, %s98
    %p112 = scmp.eq.s32.totalorder %s15, 3
    %p113 = por %p111, %p112
    %p115 = scmp.ne.s32.totalorder %s98, %s114
    %p116 = scmp.eq.s32.totalorder %s15, 0
    %p117 = por %p115, %p116
    %s118 = ssub.s32 %s16, %s35
    %s119 = ssub.s32 %s17, %s31
    %s120 = sor.u32 %s118, %s119
    %p121 = scmp.eq.s32.totalorder %s120, 0
    %s123 = sadd.s32 %s122, 1
    %s124 = scalar_select %p121, %s122, %s123
    %p127 = pneg %p121
    %p128 = scmp.eq.s32.totalorder %s9, 3
    %p129 = por %p127, %p128
    %p130 = scmp.ne.s32.totalorder %s122, %s125
    %p131 = scmp.eq.s32.totalorder %s9, 0
    %p132 = por %p130, %p131
    %p133 = scmp.ne.s32.totalorder %s122, %s125
    %p134 = scmp.eq.s32.totalorder %s14, 3
    %p135 = por %p133, %p134
    %p136 = scmp.ne.s32.totalorder %s125, %s126
    %p137 = scmp.eq.s32.totalorder %s14, 0
    %p138 = por %p136, %p137
    %p139 = scmp.ne.s32.totalorder %s125, %s126
    %p140 = scmp.eq.s32.totalorder %s15, 3
    %p141 = por %p139, %p140
    %p143 = scmp.ne.s32.totalorder %s126, %s142
    %p144 = scmp.eq.s32.totalorder %s15, 0
    %p145 = por %p143, %p144
    %p146 = scmp.le.s32.totalorder 1, %s9
    %p147 = scmp.lt.s32.totalorder %s9, 5
    %p148 = pnand %p146, %p147
    %p149 = pneg %p148
    // Predicated region
    $region9: #{tpu_custom_call.1} parent=5 // pred_check
      _
    $region10: #{tpu_custom_call.1} parent=5 // pred_check_branch
      %151 = sbr.rel (%p148) target = $region12
    $region11: #{tpu_custom_call.1} parent=5 // pred_region
      %s152 = ssub.s32 %s9, 1
      // Predicated region
      $region13: #{tpu_custom_call.1} parent=11 // pred_check
        %p153 = pneg %p84
      $region14: #{tpu_custom_call.1} parent=11 // pred_check_branch
        %155 = sbr.rel (%p153) target = $region16
      $region15: #{tpu_custom_call.1} parent=11 // pred_region
        %s156 = smul.u32 4, %s21
        %p157 = scmp.lt.s32.totalorder %s156, 3
        %s158 = scalar_select %p157, %s156, 3
        %p159 = scmp.lt.s32.totalorder %s20, 0
        %s160 = scalar_select %p159, %s20, 0
        %s161 = sadd.s32 %s160, %s158
        %s162 = smul.addr %s161, 4
        %s163 = scalar_lea.vmem %s1, %s162
        %s164 = smul.u32 4, %s21
      $region16: #{tpu_custom_call.1} parent=11 // pred_fallthru
        _
      // Predicated region
      $region17: #{tpu_custom_call.1} parent=11 // pred_check
        %p165 = pneg %p110
      $region18: #{tpu_custom_call.1} parent=11 // pred_check_branch
        %167 = sbr.rel (%p165) target = $region20
      $region19: #{tpu_custom_call.1} parent=11 // pred_region
        %p168 = scmp.lt.s32.totalorder %s20, 0
        %s169 = scalar_select %p168, %s20, 0
        %s170 = scalar_lea.vmem %s2, %s169
      $region20: #{tpu_custom_call.1} parent=11 // pred_fallthru
        _
    $region12: #{tpu_custom_call.1} parent=5 // pred_fallthru
      _
    %p171 = scmp.lt.s32.totalorder %s9, 4
    // Predicated region
    $region21: #{tpu_custom_call.1} parent=5 // pred_check
      %p172 = pneg %p171
    $region22: #{tpu_custom_call.1} parent=5 // pred_check_branch
      %174 = sbr.rel (%p172) target = $region24
    $region23: #{tpu_custom_call.1} parent=5 // pred_region
      // Predicated region
      $region25: #{tpu_custom_call.1} parent=23 // pred_check
        %p175 = pneg %p50
      $region26: #{tpu_custom_call.1} parent=23 // pred_check_branch
        %177 = sbr.rel (%p175) target = $region28
      $region27: #{tpu_custom_call.1} parent=23 // pred_region
        %s178 = smul.u32 64, %s16
        %p179 = scmp.lt.s32.totalorder %s178, 255
        %s180 = scalar_select %p179, %s178, 255
        %p181 = scmp.lt.s32.totalorder %s18, 0
        %s182 = scalar_select %p181, %s18, 0
        %s183 = sadd.s32 %s182, %s180
        %s184 = smul.addr %s183, 4
        %s185 = scalar_lea.vmem %s0, %s184
        %s186 = smul.u32 64, %s16
      $region28: #{tpu_custom_call.1} parent=23 // pred_fallthru
        _
    $region24: #{tpu_custom_call.1} parent=5 // pred_fallthru
      _
    %p187 = scmp.le.s32.totalorder 1, %s9
    %p188 = scmp.lt.s32.totalorder %s9, 5
    %p189 = pnand %p187, %p188
    %p190 = pneg %p189
    // Predicated region
    $region29: #{tpu_custom_call.1} parent=5 // pred_check
      _
    $region30: #{tpu_custom_call.1} parent=5 // pred_check_branch
      %192 = sbr.rel (%p189) target = $region32
    $region31: #{tpu_custom_call.1} parent=5 // pred_region
      %s193 = ssub.s32 %s9, 1
      %s194 = smul.u32 64, %s19
      %p195 = scmp.lt.s32.totalorder %s194, 255
      %s196 = scalar_select %p195, %s194, 255
      %p197 = scmp.lt.s32.totalorder %s21, 0
      %s198 = scalar_select %p197, %s21, 0
      %s199 = sadd.s32 %s198, %s196
      %s200 = smul.addr %s199, 4
      %s201 = scalar_lea.vmem %s0, %s200
      %p202 = pneg %p56
      %p203 = pneg %p53
      %s204 = smul.u32 4, %s21
      %p205 = scmp.lt.s32.totalorder %s204, 3
      %s206 = scalar_select %p205, %s204, 3
      %p207 = scmp.lt.s32.totalorder %s20, 0
      %s208 = scalar_select %p207, %s20, 0
      %s209 = sadd.s32 %s208, %s206
      %s210 = smul.addr %s209, 4
      %s211 = scalar_lea.vmem %s1, %s210
      %p212 = pneg %p84
      %p213 = pneg %p81
      %p214 = scmp.lt.s32.totalorder %s20, 0
      %s215 = scalar_select %p214, %s20, 0
      %s216 = scalar_lea.vmem %s2, %s215
      %p217 = pneg %p110
      %p218 = pneg %p107
      %p219 = pneg %p138
      %p220 = pneg %p135
      %s221 = smul.u32 64, %s19
      %p222 = scmp.lt.s32.totalorder %s221, 255
      %s223 = scalar_select %p222, %s221, 255
      %p224 = scmp.lt.s32.totalorder %s20, 0
      %s225 = scalar_select %p224, %s20, 0
      %s226 = sadd.s32 %s225, %s223
      %s227 = smul.addr %s226, 4
      %s228 = scalar_lea.vmem %s3, %s227
      %s229 = smul.u32 64, %s19
      %p230 = scmp.lt.s32.totalorder %s229, 255
      %s231 = scalar_select %p230, %s229, 255
      %p232 = scmp.lt.s32.totalorder %s21, 0
      %s233 = scalar_select %p232, %s21, 0
      %s234 = sadd.s32 %s233, %s231
      %s235 = smul.addr %s234, 4
      %s236 = scalar_lea.vmem %s0, %s235
      %s237 = smul.u32 64, %s19
      %s238 = smul.u32 4, %s21
      %p239 = scmp.lt.s32.totalorder %s238, 3
      %s240 = scalar_select %p239, %s238, 3
      %p241 = scmp.lt.s32.totalorder %s20, 0
      %s242 = scalar_select %p241, %s20, 0
      %s243 = sadd.s32 %s242, %s240
      %s244 = smul.addr %s243, 4
      %s245 = scalar_lea.vmem %s1, %s244
      %s246 = smul.u32 4, %s21
      %p247 = scmp.lt.s32.totalorder %s20, 0
      %s248 = scalar_select %p247, %s20, 0
      %s249 = scalar_lea.vmem %s2, %s248
      %s250 = smul.u32 64, %s19
      %p251 = scmp.lt.s32.totalorder %s250, 255
      %s252 = scalar_select %p251, %s250, 255
      %p253 = scmp.lt.s32.totalorder %s20, 0
      %s254 = scalar_select %p253, %s20, 0
      %s255 = sadd.s32 %s254, %s252
      %s256 = smul.addr %s255, 4
      %s257 = scalar_lea.vmem %s3, %s256
      %s258 = smul.u32 64, %s19
      %p260 = scmp.eq.s32.totalorder %s21, 0
      // Predicated region
      $region33: #{tpu_custom_call.1} parent=31 // pred_check
        %p261 = pneg %p260
      $region34: #{tpu_custom_call.1} parent=31 // pred_check_branch
        %263 = sbr.rel (%p261) target = $region36
      $region35: #{tpu_custom_call.1} parent=31 // pred_region
        %vm264 = vcmask 523264
        %265 = vst.msk [vmem:[#allocation2] sm:$0xff] %vm264, 0.0
        %266 = vst.msk [vmem:[#allocation2 + $0x8] sm:$0xff] %vm264, 0.0
        %267 = vst.msk [vmem:[#allocation2 + $0x10] sm:$0xff] %vm264, 0.0
        %268 = vst.msk [vmem:[#allocation2 + $0x18] sm:$0xff] %vm264, 0.0
        %269 = vst.msk [vmem:[#allocation2 + $0x20] sm:$0xff] %vm264, 0.0
        %270 = vst.msk [vmem:[#allocation2 + $0x28] sm:$0xff] %vm264, 0.0
        %271 = vst.msk [vmem:[#allocation2 + $0x30] sm:$0xff] %vm264, 0.0
        %272 = vst.msk [vmem:[#allocation2 + $0x38] sm:$0xff] %vm264, 0.0
        %273 = vst.msk [vmem:[#allocation2 + $0x40] sm:$0xff] %vm264, 0.0
        %274 = vst.msk [vmem:[#allocation2 + $0x48] sm:$0xff] %vm264, 0.0
        %275 = vst.msk [vmem:[#allocation2 + $0x50] sm:$0xff] %vm264, 0.0
        %276 = vst.msk [vmem:[#allocation2 + $0x58] sm:$0xff] %vm264, 0.0
        %277 = vst.msk [vmem:[#allocation2 + $0x60] sm:$0xff] %vm264, 0.0
        %278 = vst.msk [vmem:[#allocation2 + $0x68] sm:$0xff] %vm264, 0.0
        %279 = vst.msk [vmem:[#allocation2 + $0x70] sm:$0xff] %vm264, 0.0
        %280 = vst.msk [vmem:[#allocation2 + $0x78] sm:$0xff] %vm264, 0.0
        %281 = vst.msk [vmem:[#allocation2 + $0x80] sm:$0xff] %vm264, 0.0
        %282 = vst.msk [vmem:[#allocation2 + $0x88] sm:$0xff] %vm264, 0.0
        %283 = vst.msk [vmem:[#allocation2 + $0x90] sm:$0xff] %vm264, 0.0
        %284 = vst.msk [vmem:[#allocation2 + $0x98] sm:$0xff] %vm264, 0.0
        %285 = vst.msk [vmem:[#allocation2 + $0xa0] sm:$0xff] %vm264, 0.0
        %286 = vst.msk [vmem:[#allocation2 + $0xa8] sm:$0xff] %vm264, 0.0
        %287 = vst.msk [vmem:[#allocation2 + $0xb0] sm:$0xff] %vm264, 0.0
        %288 = vst.msk [vmem:[#allocation2 + $0xb8] sm:$0xff] %vm264, 0.0
        %289 = vst.msk [vmem:[#allocation2 + $0xc0] sm:$0xff] %vm264, 0.0
        %290 = vst.msk [vmem:[#allocation2 + $0xc8] sm:$0xff] %vm264, 0.0
        %291 = vst.msk [vmem:[#allocation2 + $0xd0] sm:$0xff] %vm264, 0.0
        %292 = vst.msk [vmem:[#allocation2 + $0xd8] sm:$0xff] %vm264, 0.0
        %293 = vst.msk [vmem:[#allocation2 + $0xe0] sm:$0xff] %vm264, 0.0
        %294 = vst.msk [vmem:[#allocation2 + $0xe8] sm:$0xff] %vm264, 0.0
        %295 = vst.msk [vmem:[#allocation2 + $0xf0] sm:$0xff] %vm264, 0.0
        %296 = vst.msk [vmem:[#allocation2 + $0xf8] sm:$0xff] %vm264, 0.0
        %297 = vst.msk [vmem:[#allocation2 + $0x100] sm:$0xff] %vm264, 0.0
        %298 = vst.msk [vmem:[#allocation2 + $0x108] sm:$0xff] %vm264, 0.0
        %299 = vst.msk [vmem:[#allocation2 + $0x110] sm:$0xff] %vm264, 0.0
        %300 = vst.msk [vmem:[#allocation2 + $0x118] sm:$0xff] %vm264, 0.0
        %301 = vst.msk [vmem:[#allocation2 + $0x120] sm:$0xff] %vm264, 0.0
        %302 = vst.msk [vmem:[#allocation2 + $0x128] sm:$0xff] %vm264, 0.0
        %303 = vst.msk [vmem:[#allocation2 + $0x130] sm:$0xff] %vm264, 0.0
        %304 = vst.msk [vmem:[#allocation2 + $0x138] sm:$0xff] %vm264, 0.0
        %305 = vst.msk [vmem:[#allocation2 + $0x140] sm:$0xff] %vm264, 0.0
        %306 = vst.msk [vmem:[#allocation2 + $0x148] sm:$0xff] %vm264, 0.0
        %307 = vst.msk [vmem:[#allocation2 + $0x150] sm:$0xff] %vm264, 0.0
        %308 = vst.msk [vmem:[#allocation2 + $0x158] sm:$0xff] %vm264, 0.0
        %309 = vst.msk [vmem:[#allocation2 + $0x160] sm:$0xff] %vm264, 0.0
        %310 = vst.msk [vmem:[#allocation2 + $0x168] sm:$0xff] %vm264, 0.0
        %311 = vst.msk [vmem:[#allocation2 + $0x170] sm:$0xff] %vm264, 0.0
        %312 = vst.msk [vmem:[#allocation2 + $0x178] sm:$0xff] %vm264, 0.0
        %313 = vst.msk [vmem:[#allocation2 + $0x180] sm:$0xff] %vm264, 0.0
        %314 = vst.msk [vmem:[#allocation2 + $0x188] sm:$0xff] %vm264, 0.0
        %315 = vst.msk [vmem:[#allocation2 + $0x190] sm:$0xff] %vm264, 0.0
        %316 = vst.msk [vmem:[#allocation2 + $0x198] sm:$0xff] %vm264, 0.0
        %317 = vst.msk [vmem:[#allocation2 + $0x1a0] sm:$0xff] %vm264, 0.0
        %318 = vst.msk [vmem:[#allocation2 + $0x1a8] sm:$0xff] %vm264, 0.0
        %319 = vst.msk [vmem:[#allocation2 + $0x1b0] sm:$0xff] %vm264, 0.0
        %320 = vst.msk [vmem:[#allocation2 + $0x1b8] sm:$0xff] %vm264, 0.0
        %321 = vst.msk [vmem:[#allocation2 + $0x1c0] sm:$0xff] %vm264, 0.0
        %322 = vst.msk [vmem:[#allocation2 + $0x1c8] sm:$0xff] %vm264, 0.0
        %323 = vst.msk [vmem:[#allocation2 + $0x1d0] sm:$0xff] %vm264, 0.0
        %324 = vst.msk [vmem:[#allocation2 + $0x1d8] sm:$0xff] %vm264, 0.0
        %325 = vst.msk [vmem:[#allocation2 + $0x1e0] sm:$0xff] %vm264, 0.0
        %326 = vst.msk [vmem:[#allocation2 + $0x1e8] sm:$0xff] %vm264, 0.0
        %327 = vst.msk [vmem:[#allocation2 + $0x1f0] sm:$0xff] %vm264, 0.0
        %328 = vst.msk [vmem:[#allocation2 + $0x1f8] sm:$0xff] %vm264, 0.0
      $region36: #{tpu_custom_call.1} parent=31 // pred_fallthru
        _
      %v329 = vld [vmem:[#allocation2] sm:$0xff]
      %v330 = vld [vmem:[#allocation2 + $0x8] sm:$0xff]
      %v331 = vld [vmem:[#allocation2 + $0x10] sm:$0xff]
      %v332 = vld [vmem:[#allocation2 + $0x18] sm:$0xff]
      %v333 = vld [vmem:[#allocation2 + $0x20] sm:$0xff]
      %v334 = vld [vmem:[#allocation2 + $0x28] sm:$0xff]
      %v335 = vld [vmem:[#allocation2 + $0x30] sm:$0xff]
      %v336 = vld [vmem:[#allocation2 + $0x38] sm:$0xff]
      %v337 = vld [vmem:[#allocation2 + $0x40] sm:$0xff]
      %v338 = vld [vmem:[#allocation2 + $0x48] sm:$0xff]
      %v339 = vld [vmem:[#allocation2 + $0x50] sm:$0xff]
      %v340 = vld [vmem:[#allocation2 + $0x58] sm:$0xff]
      %v341 = vld [vmem:[#allocation2 + $0x60] sm:$0xff]
      %v342 = vld [vmem:[#allocation2 + $0x68] sm:$0xff]
      %v343 = vld [vmem:[#allocation2 + $0x70] sm:$0xff]
      %v344 = vld [vmem:[#allocation2 + $0x78] sm:$0xff]
      %v345 = vld [vmem:[#allocation2 + $0x80] sm:$0xff]
      %v346 = vld [vmem:[#allocation2 + $0x88] sm:$0xff]
      %v347 = vld [vmem:[#allocation2 + $0x90] sm:$0xff]
      %v348 = vld [vmem:[#allocation2 + $0x98] sm:$0xff]
      %v349 = vld [vmem:[#allocation2 + $0xa0] sm:$0xff]
      %v350 = vld [vmem:[#allocation2 + $0xa8] sm:$0xff]
      %v351 = vld [vmem:[#allocation2 + $0xb0] sm:$0xff]
      %v352 = vld [vmem:[#allocation2 + $0xb8] sm:$0xff]
      %v353 = vld [vmem:[#allocation2 + $0xc0] sm:$0xff]
      %v354 = vld [vmem:[#allocation2 + $0xc8] sm:$0xff]
      %v355 = vld [vmem:[#allocation2 + $0xd0] sm:$0xff]
      %v356 = vld [vmem:[#allocation2 + $0xd8] sm:$0xff]
      %v357 = vld [vmem:[#allocation2 + $0xe0] sm:$0xff]
      %v358 = vld [vmem:[#allocation2 + $0xe8] sm:$0xff]
      %v359 = vld [vmem:[#allocation2 + $0xf0] sm:$0xff]
      %v360 = vld [vmem:[#allocation2 + $0xf8] sm:$0xff]
      %v361 = vld [vmem:[#allocation2 + $0x100] sm:$0xff]
      %v362 = vld [vmem:[#allocation2 + $0x108] sm:$0xff]
      %v363 = vld [vmem:[#allocation2 + $0x110] sm:$0xff]
      %v364 = vld [vmem:[#allocation2 + $0x118] sm:$0xff]
      %v365 = vld [vmem:[#allocation2 + $0x120] sm:$0xff]
      %v366 = vld [vmem:[#allocation2 + $0x128] sm:$0xff]
      %v367 = vld [vmem:[#allocation2 + $0x130] sm:$0xff]
      %v368 = vld [vmem:[#allocation2 + $0x138] sm:$0xff]
      %v369 = vld [vmem:[#allocation2 + $0x140] sm:$0xff]
      %v370 = vld [vmem:[#allocation2 + $0x148] sm:$0xff]
      %v371 = vld [vmem:[#allocation2 + $0x150] sm:$0xff]
      %v372 = vld [vmem:[#allocation2 + $0x158] sm:$0xff]
      %v373 = vld [vmem:[#allocation2 + $0x160] sm:$0xff]
      %v374 = vld [vmem:[#allocation2 + $0x168] sm:$0xff]
      %v375 = vld [vmem:[#allocation2 + $0x170] sm:$0xff]
      %v376 = vld [vmem:[#allocation2 + $0x178] sm:$0xff]
      %v377 = vld [vmem:[#allocation2 + $0x180] sm:$0xff]
      %v378 = vld [vmem:[#allocation2 + $0x188] sm:$0xff]
      %v379 = vld [vmem:[#allocation2 + $0x190] sm:$0xff]
      %v380 = vld [vmem:[#allocation2 + $0x198] sm:$0xff]
      %v381 = vld [vmem:[#allocation2 + $0x1a0] sm:$0xff]
      %v382 = vld [vmem:[#allocation2 + $0x1a8] sm:$0xff]
      %v383 = vld [vmem:[#allocation2 + $0x1b0] sm:$0xff]
      %v384 = vld [vmem:[#allocation2 + $0x1b8] sm:$0xff]
      %v385 = vld [vmem:[#allocation2 + $0x1c0] sm:$0xff]
      %v386 = vld [vmem:[#allocation2 + $0x1c8] sm:$0xff]
      %v387 = vld [vmem:[#allocation2 + $0x1d0] sm:$0xff]
      %v388 = vld [vmem:[#allocation2 + $0x1d8] sm:$0xff]
      %v389 = vld [vmem:[#allocation2 + $0x1e0] sm:$0xff]
      %v390 = vld [vmem:[#allocation2 + $0x1e8] sm:$0xff]
      %v391 = vld [vmem:[#allocation2 + $0x1f0] sm:$0xff]
      %v392 = vld [vmem:[#allocation2 + $0x1f8] sm:$0xff]
      %v393 = vld [vmem:[%s236] sm:$0xf]
      %v394 = vld [vmem:[%s236 + $0x4] sm:$0xf]
      %v395 = vld [vmem:[%s236 + $0x8] sm:$0xf]
      %v396 = vld [vmem:[%s236 + $0xc] sm:$0xf]
      %v397 = vld [vmem:[%s236 + $0x10] sm:$0xf]
      %v398 = vld [vmem:[%s236 + $0x14] sm:$0xf]
      %v399 = vld [vmem:[%s236 + $0x18] sm:$0xf]
      %v400 = vld [vmem:[%s236 + $0x1c] sm:$0xf]
      %v401 = vld [vmem:[%s236 + $0x20] sm:$0xf]
      %v402 = vld [vmem:[%s236 + $0x24] sm:$0xf]
      %v403 = vld [vmem:[%s236 + $0x28] sm:$0xf]
      %v404 = vld [vmem:[%s236 + $0x2c] sm:$0xf]
      %v405 = vld [vmem:[%s236 + $0x30] sm:$0xf]
      %v406 = vld [vmem:[%s236 + $0x34] sm:$0xf]
      %v407 = vld [vmem:[%s236 + $0x38] sm:$0xf]
      %v408 = vld [vmem:[%s236 + $0x3c] sm:$0xf]
      %v409 = vld [vmem:[%s236 + $0x40] sm:$0xf]
      %v410 = vld [vmem:[%s236 + $0x44] sm:$0xf]
      %v411 = vld [vmem:[%s236 + $0x48] sm:$0xf]
      %v412 = vld [vmem:[%s236 + $0x4c] sm:$0xf]
      %v413 = vld [vmem:[%s236 + $0x50] sm:$0xf]
      %v414 = vld [vmem:[%s236 + $0x54] sm:$0xf]
      %v415 = vld [vmem:[%s236 + $0x58] sm:$0xf]
      %v416 = vld [vmem:[%s236 + $0x5c] sm:$0xf]
      %v417 = vld [vmem:[%s236 + $0x60] sm:$0xf]
      %v418 = vld [vmem:[%s236 + $0x64] sm:$0xf]
      %v419 = vld [vmem:[%s236 + $0x68] sm:$0xf]
      %v420 = vld [vmem:[%s236 + $0x6c] sm:$0xf]
      %v421 = vld [vmem:[%s236 + $0x70] sm:$0xf]
      %v422 = vld [vmem:[%s236 + $0x74] sm:$0xf]
      %v423 = vld [vmem:[%s236 + $0x78] sm:$0xf]
      %v424 = vld [vmem:[%s236 + $0x7c] sm:$0xf]
      %v425 = vld [vmem:[%s236 + $0x80] sm:$0xf]
      %v426 = vld [vmem:[%s236 + $0x84] sm:$0xf]
      %v427 = vld [vmem:[%s236 + $0x88] sm:$0xf]
      %v428 = vld [vmem:[%s236 + $0x8c] sm:$0xf]
      %v429 = vld [vmem:[%s236 + $0x90] sm:$0xf]
      %v430 = vld [vmem:[%s236 + $0x94] sm:$0xf]
      %v431 = vld [vmem:[%s236 + $0x98] sm:$0xf]
      %v432 = vld [vmem:[%s236 + $0x9c] sm:$0xf]
      %v433 = vld [vmem:[%s236 + $0xa0] sm:$0xf]
      %v434 = vld [vmem:[%s236 + $0xa4] sm:$0xf]
      %v435 = vld [vmem:[%s236 + $0xa8] sm:$0xf]
      %v436 = vld [vmem:[%s236 + $0xac] sm:$0xf]
      %v437 = vld [vmem:[%s236 + $0xb0] sm:$0xf]
      %v438 = vld [vmem:[%s236 + $0xb4] sm:$0xf]
      %v439 = vld [vmem:[%s236 + $0xb8] sm:$0xf]
      %v440 = vld [vmem:[%s236 + $0xbc] sm:$0xf]
      %v441 = vld [vmem:[%s236 + $0xc0] sm:$0xf]
      %v442 = vld [vmem:[%s236 + $0xc4] sm:$0xf]
      %v443 = vld [vmem:[%s236 + $0xc8] sm:$0xf]
      %v444 = vld [vmem:[%s236 + $0xcc] sm:$0xf]
      %v445 = vld [vmem:[%s236 + $0xd0] sm:$0xf]
      %v446 = vld [vmem:[%s236 + $0xd4] sm:$0xf]
      %v447 = vld [vmem:[%s236 + $0xd8] sm:$0xf]
      %v448 = vld [vmem:[%s236 + $0xdc] sm:$0xf]
      %v449 = vld [vmem:[%s236 + $0xe0] sm:$0xf]
      %v450 = vld [vmem:[%s236 + $0xe4] sm:$0xf]
      %v451 = vld [vmem:[%s236 + $0xe8] sm:$0xf]
      %v452 = vld [vmem:[%s236 + $0xec] sm:$0xf]
      %v453 = vld [vmem:[%s236 + $0xf0] sm:$0xf]
      %v454 = vld [vmem:[%s236 + $0xf4] sm:$0xf]
      %v455 = vld [vmem:[%s236 + $0xf8] sm:$0xf]
      %v456 = vld [vmem:[%s236 + $0xfc] sm:$0xf]
      %v457 = vld [vmem:[%s245] sm:$0xf]
      %v458 = vld [vmem:[%s245 + $0x4] sm:$0xf]
      %v459 = vld [vmem:[%s245 + $0x8] sm:$0xf]
      %v460 = vld [vmem:[%s245 + $0xc] sm:$0x3]
      %v525 = vunpack.c.l.b16 %v393
      %v526 = vunpack.c.l.b16 %v394
      %v527 = vunpack.c.l.b16 %v395
      %v528 = vunpack.c.l.b16 %v396
      %v529 = vunpack.c.l.b16 %v397
      %v530 = vunpack.c.l.b16 %v398
      %v531 = vunpack.c.l.b16 %v399
      %v532 = vunpack.c.l.b16 %v400
      %v533 = vunpack.c.l.b16 %v401
      %v534 = vunpack.c.l.b16 %v402
      %v535 = vunpack.c.l.b16 %v403
      %v536 = vunpack.c.l.b16 %v404
      %v537 = vunpack.c.l.b16 %v405
      %v538 = vunpack.c.l.b16 %v406
      %v539 = vunpack.c.l.b16 %v407
      %v540 = vunpack.c.l.b16 %v408
      %v541 = vunpack.c.l.b16 %v409
      %v542 = vunpack.c.l.b16 %v410
      %v543 = vunpack.c.l.b16 %v411
      %v544 = vunpack.c.l.b16 %v412
      %v545 = vunpack.c.l.b16 %v413
      %v546 = vunpack.c.l.b16 %v414
      %v547 = vunpack.c.l.b16 %v415
      %v548 = vunpack.c.l.b16 %v416
      %v549 = vunpack.c.l.b16 %v417
      %v550 = vunpack.c.l.b16 %v418
      %v551 = vunpack.c.l.b16 %v419
      %v552 = vunpack.c.l.b16 %v420
      %v553 = vunpack.c.l.b16 %v421
      %v554 = vunpack.c.l.b16 %v422
      %v555 = vunpack.c.l.b16 %v423
      %v556 = vunpack.c.l.b16 %v424
      %v557 = vunpack.c.l.b16 %v425
      %v558 = vunpack.c.l.b16 %v426
      %v559 = vunpack.c.l.b16 %v427
      %v560 = vunpack.c.l.b16 %v428
      %v561 = vunpack.c.l.b16 %v429
      %v562 = vunpack.c.l.b16 %v430
      %v563 = vunpack.c.l.b16 %v431
      %v564 = vunpack.c.l.b16 %v432
      %v565 = vunpack.c.l.b16 %v433
      %v566 = vunpack.c.l.b16 %v434
      %v567 = vunpack.c.l.b16 %v435
      %v568 = vunpack.c.l.b16 %v436
      %v569 = vunpack.c.l.b16 %v437
      %v570 = vunpack.c.l.b16 %v438
      %v571 = vunpack.c.l.b16 %v439
      %v572 = vunpack.c.l.b16 %v440
      %v573 = vunpack.c.l.b16 %v441
      %v574 = vunpack.c.l.b16 %v442
      %v575 = vunpack.c.l.b16 %v443
      %v576 = vunpack.c.l.b16 %v444
      %v577 = vunpack.c.l.b16 %v445
      %v578 = vunpack.c.l.b16 %v446
      %v579 = vunpack.c.l.b16 %v447
      %v580 = vunpack.c.l.b16 %v448
      %v581 = vunpack.c.l.b16 %v449
      %v582 = vunpack.c.l.b16 %v450
      %v583 = vunpack.c.l.b16 %v451
      %v584 = vunpack.c.l.b16 %v452
      %v585 = vunpack.c.l.b16 %v453
      %v586 = vunpack.c.l.b16 %v454
      %v587 = vunpack.c.l.b16 %v455
      %v588 = vunpack.c.l.b16 %v456
      %v589 = vpack.c.b16 %v526, %v525
      %v590 = vpack.c.b16 %v528, %v527
      %v591 = vpack.c.b16 %v530, %v529
      %v592 = vpack.c.b16 %v532, %v531
      %v593 = vpack.c.b16 %v534, %v533
      %v594 = vpack.c.b16 %v536, %v535
      %v595 = vpack.c.b16 %v538, %v537
      %v596 = vpack.c.b16 %v540, %v539
      %v597 = vpack.c.b16 %v542, %v541
      %v598 = vpack.c.b16 %v544, %v543
      %v599 = vpack.c.b16 %v546, %v545
      %v600 = vpack.c.b16 %v548, %v547
      %v601 = vpack.c.b16 %v550, %v549
      %v602 = vpack.c.b16 %v552, %v551
      %v603 = vpack.c.b16 %v554, %v553
      %v604 = vpack.c.b16 %v556, %v555
      %v605 = vpack.c.b16 %v558, %v557
      %v606 = vpack.c.b16 %v560, %v559
      %v607 = vpack.c.b16 %v562, %v561
      %v608 = vpack.c.b16 %v564, %v563
      %v609 = vpack.c.b16 %v566, %v565
      %v610 = vpack.c.b16 %v568, %v567
      %v611 = vpack.c.b16 %v570, %v569
      %v612 = vpack.c.b16 %v572, %v571
      %v613 = vpack.c.b16 %v574, %v573
      %v614 = vpack.c.b16 %v576, %v575
      %v615 = vpack.c.b16 %v578, %v577
      %v616 = vpack.c.b16 %v580, %v579
      %v617 = vpack.c.b16 %v582, %v581
      %v618 = vpack.c.b16 %v584, %v583
      %v619 = vpack.c.b16 %v586, %v585
      %v620 = vpack.c.b16 %v588, %v587
      %v625 = vunpack.c.l.b16 %v457
      %v626 = vunpack.c.l.b16 %v458
      %v627 = vunpack.c.l.b16 %v459
      %v628 = vunpack.c.l.b16 %v460
      %v629 = vpack.c.b16 %v626, %v625
      %v630 = vpack.c.b16 %v628, %v627
      %vm632 = vcmask 220160
      %v634 = vsel %vm632, %v589, 0
      %v637 = vsel %vm632, %v590, 0
      %v640 = vsel %vm632, %v591, 0
      %v643 = vsel %vm632, %v592, 0
      %v646 = vsel %vm632, %v593, 0
      %v649 = vsel %vm632, %v594, 0
      %v652 = vsel %vm632, %v595, 0
      %v655 = vsel %vm632, %v596, 0
      %v658 = vsel %vm632, %v597, 0
      %v661 = vsel %vm632, %v598, 0
      %v664 = vsel %vm632, %v599, 0
      %v667 = vsel %vm632, %v600, 0
      %v670 = vsel %vm632, %v601, 0
      %v673 = vsel %vm632, %v602, 0
      %v676 = vsel %vm632, %v603, 0
      %v679 = vsel %vm632, %v604, 0
      %v682 = vsel %vm632, %v605, 0
      %v685 = vsel %vm632, %v606, 0
      %v688 = vsel %vm632, %v607, 0
      %v691 = vsel %vm632, %v608, 0
      %v694 = vsel %vm632, %v609, 0
      %v697 = vsel %vm632, %v610, 0
      %v700 = vsel %vm632, %v611, 0
      %v703 = vsel %vm632, %v612, 0
      %v706 = vsel %vm632, %v613, 0
      %v709 = vsel %vm632, %v614, 0
      %v712 = vsel %vm632, %v615, 0
      %v715 = vsel %vm632, %v616, 0
      %v718 = vsel %vm632, %v617, 0
      %v721 = vsel %vm632, %v618, 0
      %v724 = vsel %vm632, %v619, 0
      %v727 = vsel %vm632, %v620, 0
      %vm729 = vcmask 1044480
      %vm730 = vcmask 1045504
      %v731 = vsel %vm729, 4294967295, 65535
      %v732 = vsel %vm730, %v731, 0
      %v734 = vand.u32 %v630, %v732
      %736 = vmatpush.bf16.msra.mxu0 0
      %737 = vmatpush.bf16.msra.mxu0 0
      %738 = vmatpush.bf16.msra.mxu0 0
      %739 = vmatpush.bf16.msra.mxu0 0
      %740 = vmatpush.bf16.msra.mxu0 0
      %741 = vmatpush.bf16.msra.mxu0 0
      %742 = vmatpush.bf16.msra.mxu0 %v734
      %743 = vmatpush.bf16.msra.mxu0 %v629
      %744 = vmatmul.bf16.gmra.mxu0 %v634
      %v745 = vpop.f32.mrf.mxu0
      %v746 = vadd.f32 0.0, %v745
      %v747 = vpop.f32.mrf.mxu0
      %v748 = vadd.f32 0.0, %v747
      %749 = vmatmul.bf16.gmra.mxu0 %v637
      %v750 = vpop.f32.mrf.mxu0
      %v751 = vadd.f32 0.0, %v750
      %v752 = vpop.f32.mrf.mxu0
      %v753 = vadd.f32 0.0, %v752
      %754 = vmatmul.bf16.gmra.mxu0 %v640
      %v755 = vpop.f32.mrf.mxu0
      %v756 = vadd.f32 0.0, %v755
      %v757 = vpop.f32.mrf.mxu0
      %v758 = vadd.f32 0.0, %v757
      %759 = vmatmul.bf16.gmra.mxu0 %v643
      %v760 = vpop.f32.mrf.mxu0
      %v761 = vadd.f32 0.0, %v760
      %v762 = vpop.f32.mrf.mxu0
      %v763 = vadd.f32 0.0, %v762
      %764 = vmatmul.bf16.gmra.mxu0 %v646
      %v765 = vpop.f32.mrf.mxu0
      %v766 = vadd.f32 0.0, %v765
      %v767 = vpop.f32.mrf.mxu0
      %v768 = vadd.f32 0.0, %v767
      %769 = vmatmul.bf16.gmra.mxu0 %v649
      %v770 = vpop.f32.mrf.mxu0
      %v771 = vadd.f32 0.0, %v770
      %v772 = vpop.f32.mrf.mxu0
      %v773 = vadd.f32 0.0, %v772
      %774 = vmatmul.bf16.gmra.mxu0 %v652
      %v775 = vpop.f32.mrf.mxu0
      %v776 = vadd.f32 0.0, %v775
      %v777 = vpop.f32.mrf.mxu0
      %v778 = vadd.f32 0.0, %v777
      %779 = vmatmul.bf16.gmra.mxu0 %v655
      %v780 = vpop.f32.mrf.mxu0
      %v781 = vadd.f32 0.0, %v780
      %v782 = vpop.f32.mrf.mxu0
      %v783 = vadd.f32 0.0, %v782
      %784 = vmatmul.bf16.gmra.mxu0 %v658
      %v785 = vpop.f32.mrf.mxu0
      %v786 = vadd.f32 0.0, %v785
      %v787 = vpop.f32.mrf.mxu0
      %v788 = vadd.f32 0.0, %v787
      %789 = vmatmul.bf16.gmra.mxu0 %v661
      %v790 = vpop.f32.mrf.mxu0
      %v791 = vadd.f32 0.0, %v790
      %v792 = vpop.f32.mrf.mxu0
      %v793 = vadd.f32 0.0, %v792
      %794 = vmatmul.bf16.gmra.mxu0 %v664
      %v795 = vpop.f32.mrf.mxu0
      %v796 = vadd.f32 0.0, %v795
      %v797 = vpop.f32.mrf.mxu0
      %v798 = vadd.f32 0.0, %v797
      %799 = vmatmul.bf16.gmra.mxu0 %v667
      %v800 = vpop.f32.mrf.mxu0
      %v801 = vadd.f32 0.0, %v800
      %v802 = vpop.f32.mrf.mxu0
      %v803 = vadd.f32 0.0, %v802
      %804 = vmatmul.bf16.gmra.mxu0 %v670
      %v805 = vpop.f32.mrf.mxu0
      %v806 = vadd.f32 0.0, %v805
      %v807 = vpop.f32.mrf.mxu0
      %v808 = vadd.f32 0.0, %v807
      %809 = vmatmul.bf16.gmra.mxu0 %v673
      %v810 = vpop.f32.mrf.mxu0
      %v811 = vadd.f32 0.0, %v810
      %v812 = vpop.f32.mrf.mxu0
      %v813 = vadd.f32 0.0, %v812
      %814 = vmatmul.bf16.gmra.mxu0 %v676
      %v815 = vpop.f32.mrf.mxu0
      %v816 = vadd.f32 0.0, %v815
      %v817 = vpop.f32.mrf.mxu0
      %v818 = vadd.f32 0.0, %v817
      %819 = vmatmul.bf16.gmra.mxu0 %v679
      %v820 = vpop.f32.mrf.mxu0
      %v821 = vadd.f32 0.0, %v820
      %v822 = vpop.f32.mrf.mxu0
      %v823 = vadd.f32 0.0, %v822
      %824 = vmatmul.bf16.gmra.mxu0 %v682
      %v825 = vpop.f32.mrf.mxu0
      %v826 = vadd.f32 0.0, %v825
      %v827 = vpop.f32.mrf.mxu0
      %v828 = vadd.f32 0.0, %v827
      %829 = vmatmul.bf16.gmra.mxu0 %v685
      %v830 = vpop.f32.mrf.mxu0
      %v831 = vadd.f32 0.0, %v830
      %v832 = vpop.f32.mrf.mxu0
      %v833 = vadd.f32 0.0, %v832
      %834 = vmatmul.bf16.gmra.mxu0 %v688
      %v835 = vpop.f32.mrf.mxu0
      %v836 = vadd.f32 0.0, %v835
      %v837 = vpop.f32.mrf.mxu0
      %v838 = vadd.f32 0.0, %v837
      %839 = vmatmul.bf16.gmra.mxu0 %v691
      %v840 = vpop.f32.mrf.mxu0
      %v841 = vadd.f32 0.0, %v840
      %v842 = vpop.f32.mrf.mxu0
      %v843 = vadd.f32 0.0, %v842
      %844 = vmatmul.bf16.gmra.mxu0 %v694
      %v845 = vpop.f32.mrf.mxu0
      %v846 = vadd.f32 0.0, %v845
      %v847 = vpop.f32.mrf.mxu0
      %v848 = vadd.f32 0.0, %v847
      %849 = vmatmul.bf16.gmra.mxu0 %v697
      %v850 = vpop.f32.mrf.mxu0
      %v851 = vadd.f32 0.0, %v850
      %v852 = vpop.f32.mrf.mxu0
      %v853 = vadd.f32 0.0, %v852
      %854 = vmatmul.bf16.gmra.mxu0 %v700
      %v855 = vpop.f32.mrf.mxu0
      %v856 = vadd.f32 0.0, %v855
      %v857 = vpop.f32.mrf.mxu0
      %v858 = vadd.f32 0.0, %v857
      %859 = vmatmul.bf16.gmra.mxu0 %v703
      %v860 = vpop.f32.mrf.mxu0
      %v861 = vadd.f32 0.0, %v860
      %v862 = vpop.f32.mrf.mxu0
      %v863 = vadd.f32 0.0, %v862
      %864 = vmatmul.bf16.gmra.mxu0 %v706
      %v865 = vpop.f32.mrf.mxu0
      %v866 = vadd.f32 0.0, %v865
      %v867 = vpop.f32.mrf.mxu0
      %v868 = vadd.f32 0.0, %v867
      %869 = vmatmul.bf16.gmra.mxu0 %v709
      %v870 = vpop.f32.mrf.mxu0
      %v871 = vadd.f32 0.0, %v870
      %v872 = vpop.f32.mrf.mxu0
      %v873 = vadd.f32 0.0, %v872
      %874 = vmatmul.bf16.gmra.mxu0 %v712
      %v875 = vpop.f32.mrf.mxu0
      %v876 = vadd.f32 0.0, %v875
      %v877 = vpop.f32.mrf.mxu0
      %v878 = vadd.f32 0.0, %v877
      %879 = vmatmul.bf16.gmra.mxu0 %v715
      %v880 = vpop.f32.mrf.mxu0
      %v881 = vadd.f32 0.0, %v880
      %v882 = vpop.f32.mrf.mxu0
      %v883 = vadd.f32 0.0, %v882
      %884 = vmatmul.bf16.gmra.mxu0 %v718
      %v885 = vpop.f32.mrf.mxu0
      %v886 = vadd.f32 0.0, %v885
      %v887 = vpop.f32.mrf.mxu0
      %v888 = vadd.f32 0.0, %v887
      %889 = vmatmul.bf16.gmra.mxu0 %v721
      %v890 = vpop.f32.mrf.mxu0
      %v891 = vadd.f32 0.0, %v890
      %v892 = vpop.f32.mrf.mxu0
      %v893 = vadd.f32 0.0, %v892
      %894 = vmatmul.bf16.gmra.mxu0 %v724
      %v895 = vpop.f32.mrf.mxu0
      %v896 = vadd.f32 0.0, %v895
      %v897 = vpop.f32.mrf.mxu0
      %v898 = vadd.f32 0.0, %v897
      %899 = vmatmul.bf16.gmra.mxu0 %v727
      %v900 = vpop.f32.mrf.mxu0
      %v901 = vadd.f32 0.0, %v900
      %v902 = vpop.f32.mrf.mxu0
      %v903 = vadd.f32 0.0, %v902
      %904 = vdwg.mxu0
      %v905 = vadd.f32 %v329, %v746
      %v906 = vadd.f32 %v330, %v748
      %v907 = vadd.f32 %v331, %v751
      %v908 = vadd.f32 %v332, %v753
      %v909 = vadd.f32 %v333, %v756
      %v910 = vadd.f32 %v334, %v758
      %v911 = vadd.f32 %v335, %v761
      %v912 = vadd.f32 %v336, %v763
      %v913 = vadd.f32 %v337, %v766
      %v914 = vadd.f32 %v338, %v768
      %v915 = vadd.f32 %v339, %v771
      %v916 = vadd.f32 %v340, %v773
      %v917 = vadd.f32 %v341, %v776
      %v918 = vadd.f32 %v342, %v778
      %v919 = vadd.f32 %v343, %v781
      %v920 = vadd.f32 %v344, %v783
      %v921 = vadd.f32 %v345, %v786
      %v922 = vadd.f32 %v346, %v788
      %v923 = vadd.f32 %v347, %v791
      %v924 = vadd.f32 %v348, %v793
      %v925 = vadd.f32 %v349, %v796
      %v926 = vadd.f32 %v350, %v798
      %v927 = vadd.f32 %v351, %v801
      %v928 = vadd.f32 %v352, %v803
      %v929 = vadd.f32 %v353, %v806
      %v930 = vadd.f32 %v354, %v808
      %v931 = vadd.f32 %v355, %v811
      %v932 = vadd.f32 %v356, %v813
      %v933 = vadd.f32 %v357, %v816
      %v934 = vadd.f32 %v358, %v818
      %v935 = vadd.f32 %v359, %v821
      %v936 = vadd.f32 %v360, %v823
      %v937 = vadd.f32 %v361, %v826
      %v938 = vadd.f32 %v362, %v828
      %v939 = vadd.f32 %v363, %v831
      %v940 = vadd.f32 %v364, %v833
      %v941 = vadd.f32 %v365, %v836
      %v942 = vadd.f32 %v366, %v838
      %v943 = vadd.f32 %v367, %v841
      %v944 = vadd.f32 %v368, %v843
      %v945 = vadd.f32 %v369, %v846
      %v946 = vadd.f32 %v370, %v848
      %v947 = vadd.f32 %v371, %v851
      %v948 = vadd.f32 %v372, %v853
      %v949 = vadd.f32 %v373, %v856
      %v950 = vadd.f32 %v374, %v858
      %v951 = vadd.f32 %v375, %v861
      %v952 = vadd.f32 %v376, %v863
      %v953 = vadd.f32 %v377, %v866
      %v954 = vadd.f32 %v378, %v868
      %v955 = vadd.f32 %v379, %v871
      %v956 = vadd.f32 %v380, %v873
      %v957 = vadd.f32 %v381, %v876
      %v958 = vadd.f32 %v382, %v878
      %v959 = vadd.f32 %v383, %v881
      %v960 = vadd.f32 %v384, %v883
      %v961 = vadd.f32 %v385, %v886
      %v962 = vadd.f32 %v386, %v888
      %v963 = vadd.f32 %v387, %v891
      %v964 = vadd.f32 %v388, %v893
      %v965 = vadd.f32 %v389, %v896
      %v966 = vadd.f32 %v390, %v898
      %v967 = vadd.f32 %v391, %v901
      %v968 = vadd.f32 %v392, %v903
      %vm969 = vcmask 523264
      %970 = vst.msk [vmem:[#allocation2] sm:$0xff] %vm969, %v905
      %971 = vst.msk [vmem:[#allocation2 + $0x8] sm:$0xff] %vm969, %v906
      %972 = vst.msk [vmem:[#allocation2 + $0x10] sm:$0xff] %vm969, %v907
      %973 = vst.msk [vmem:[#allocation2 + $0x18] sm:$0xff] %vm969, %v908
      %974 = vst.msk [vmem:[#allocation2 + $0x20] sm:$0xff] %vm969, %v909
      %975 = vst.msk [vmem:[#allocation2 + $0x28] sm:$0xff] %vm969, %v910
      %976 = vst.msk [vmem:[#allocation2 + $0x30] sm:$0xff] %vm969, %v911
      %977 = vst.msk [vmem:[#allocation2 + $0x38] sm:$0xff] %vm969, %v912
      %978 = vst.msk [vmem:[#allocation2 + $0x40] sm:$0xff] %vm969, %v913
      %979 = vst.msk [vmem:[#allocation2 + $0x48] sm:$0xff] %vm969, %v914
      %980 = vst.msk [vmem:[#allocation2 + $0x50] sm:$0xff] %vm969, %v915
      %981 = vst.msk [vmem:[#allocation2 + $0x58] sm:$0xff] %vm969, %v916
      %982 = vst.msk [vmem:[#allocation2 + $0x60] sm:$0xff] %vm969, %v917
      %983 = vst.msk [vmem:[#allocation2 + $0x68] sm:$0xff] %vm969, %v918
      %984 = vst.msk [vmem:[#allocation2 + $0x70] sm:$0xff] %vm969, %v919
      %985 = vst.msk [vmem:[#allocation2 + $0x78] sm:$0xff] %vm969, %v920
      %986 = vst.msk [vmem:[#allocation2 + $0x80] sm:$0xff] %vm969, %v921
      %987 = vst.msk [vmem:[#allocation2 + $0x88] sm:$0xff] %vm969, %v922
      %988 = vst.msk [vmem:[#allocation2 + $0x90] sm:$0xff] %vm969, %v923
      %989 = vst.msk [vmem:[#allocation2 + $0x98] sm:$0xff] %vm969, %v924
      %990 = vst.msk [vmem:[#allocation2 + $0xa0] sm:$0xff] %vm969, %v925
      %991 = vst.msk [vmem:[#allocation2 + $0xa8] sm:$0xff] %vm969, %v926
      %992 = vst.msk [vmem:[#allocation2 + $0xb0] sm:$0xff] %vm969, %v927
      %993 = vst.msk [vmem:[#allocation2 + $0xb8] sm:$0xff] %vm969, %v928
      %994 = vst.msk [vmem:[#allocation2 + $0xc0] sm:$0xff] %vm969, %v929
      %995 = vst.msk [vmem:[#allocation2 + $0xc8] sm:$0xff] %vm969, %v930
      %996 = vst.msk [vmem:[#allocation2 + $0xd0] sm:$0xff] %vm969, %v931
      %997 = vst.msk [vmem:[#allocation2 + $0xd8] sm:$0xff] %vm969, %v932
      %998 = vst.msk [vmem:[#allocation2 + $0xe0] sm:$0xff] %vm969, %v933
      %999 = vst.msk [vmem:[#allocation2 + $0xe8] sm:$0xff] %vm969, %v934
      %1000 = vst.msk [vmem:[#allocation2 + $0xf0] sm:$0xff] %vm969, %v935
      %1001 = vst.msk [vmem:[#allocation2 + $0xf8] sm:$0xff] %vm969, %v936
      %1002 = vst.msk [vmem:[#allocation2 + $0x100] sm:$0xff] %vm969, %v937
      %1003 = vst.msk [vmem:[#allocation2 + $0x108] sm:$0xff] %vm969, %v938
      %1004 = vst.msk [vmem:[#allocation2 + $0x110] sm:$0xff] %vm969, %v939
      %1005 = vst.msk [vmem:[#allocation2 + $0x118] sm:$0xff] %vm969, %v940
      %1006 = vst.msk [vmem:[#allocation2 + $0x120] sm:$0xff] %vm969, %v941
      %1007 = vst.msk [vmem:[#allocation2 + $0x128] sm:$0xff] %vm969, %v942
      %1008 = vst.msk [vmem:[#allocation2 + $0x130] sm:$0xff] %vm969, %v943
      %1009 = vst.msk [vmem:[#allocation2 + $0x138] sm:$0xff] %vm969, %v944
      %1010 = vst.msk [vmem:[#allocation2 + $0x140] sm:$0xff] %vm969, %v945
      %1011 = vst.msk [vmem:[#allocation2 + $0x148] sm:$0xff] %vm969, %v946
      %1012 = vst.msk [vmem:[#allocation2 + $0x150] sm:$0xff] %vm969, %v947
      %1013 = vst.msk [vmem:[#allocation2 + $0x158] sm:$0xff] %vm969, %v948
      %1014 = vst.msk [vmem:[#allocation2 + $0x160] sm:$0xff] %vm969, %v949
      %1015 = vst.msk [vmem:[#allocation2 + $0x168] sm:$0xff] %vm969, %v950
      %1016 = vst.msk [vmem:[#allocation2 + $0x170] sm:$0xff] %vm969, %v951
      %1017 = vst.msk [vmem:[#allocation2 + $0x178] sm:$0xff] %vm969, %v952
      %1018 = vst.msk [vmem:[#allocation2 + $0x180] sm:$0xff] %vm969, %v953
      %1019 = vst.msk [vmem:[#allocation2 + $0x188] sm:$0xff] %vm969, %v954
      %1020 = vst.msk [vmem:[#allocation2 + $0x190] sm:$0xff] %vm969, %v955
      %1021 = vst.msk [vmem:[#allocation2 + $0x198] sm:$0xff] %vm969, %v956
      %1022 = vst.msk [vmem:[#allocation2 + $0x1a0] sm:$0xff] %vm969, %v957
      %1023 = vst.msk [vmem:[#allocation2 + $0x1a8] sm:$0xff] %vm969, %v958
      %1024 = vst.msk [vmem:[#allocation2 + $0x1b0] sm:$0xff] %vm969, %v959
      %1025 = vst.msk [vmem:[#allocation2 + $0x1b8] sm:$0xff] %vm969, %v960
      %1026 = vst.msk [vmem:[#allocation2 + $0x1c0] sm:$0xff] %vm969, %v961
      %1027 = vst.msk [vmem:[#allocation2 + $0x1c8] sm:$0xff] %vm969, %v962
      %1028 = vst.msk [vmem:[#allocation2 + $0x1d0] sm:$0xff] %vm969, %v963
      %1029 = vst.msk [vmem:[#allocation2 + $0x1d8] sm:$0xff] %vm969, %v964
      %1030 = vst.msk [vmem:[#allocation2 + $0x1e0] sm:$0xff] %vm969, %v965
      %1031 = vst.msk [vmem:[#allocation2 + $0x1e8] sm:$0xff] %vm969, %v966
      %1032 = vst.msk [vmem:[#allocation2 + $0x1f0] sm:$0xff] %vm969, %v967
      %1033 = vst.msk [vmem:[#allocation2 + $0x1f8] sm:$0xff] %vm969, %v968
      // Predicated region
      $region37: #{tpu_custom_call.1} parent=31 // pred_check
        %p1034 = pneg %p260
      $region38: #{tpu_custom_call.1} parent=31 // pred_check_branch
        %1036 = sbr.rel (%p1034) target = $region40
      $region39: #{tpu_custom_call.1} parent=31 // pred_region
        %v1037 = vld [vmem:[#allocation2] sm:$0xff]
        %v1038 = vld [vmem:[#allocation2 + $0x8] sm:$0xff]
        %v1039 = vld [vmem:[#allocation2 + $0x10] sm:$0xff]
        %v1040 = vld [vmem:[#allocation2 + $0x18] sm:$0xff]
        %v1041 = vld [vmem:[#allocation2 + $0x20] sm:$0xff]
        %v1042 = vld [vmem:[#allocation2 + $0x28] sm:$0xff]
        %v1043 = vld [vmem:[#allocation2 + $0x30] sm:$0xff]
        %v1044 = vld [vmem:[#allocation2 + $0x38] sm:$0xff]
        %v1045 = vld [vmem:[#allocation2 + $0x40] sm:$0xff]
        %v1046 = vld [vmem:[#allocation2 + $0x48] sm:$0xff]
        %v1047 = vld [vmem:[#allocation2 + $0x50] sm:$0xff]
        %v1048 = vld [vmem:[#allocation2 + $0x58] sm:$0xff]
        %v1049 = vld [vmem:[#allocation2 + $0x60] sm:$0xff]
        %v1050 = vld [vmem:[#allocation2 + $0x68] sm:$0xff]
        %v1051 = vld [vmem:[#allocation2 + $0x70] sm:$0xff]
        %v1052 = vld [vmem:[#allocation2 + $0x78] sm:$0xff]
        %v1053 = vld [vmem:[#allocation2 + $0x80] sm:$0xff]
        %v1054 = vld [vmem:[#allocation2 + $0x88] sm:$0xff]
        %v1055 = vld [vmem:[#allocation2 + $0x90] sm:$0xff]
        %v1056 = vld [vmem:[#allocation2 + $0x98] sm:$0xff]
        %v1057 = vld [vmem:[#allocation2 + $0xa0] sm:$0xff]
        %v1058 = vld [vmem:[#allocation2 + $0xa8] sm:$0xff]
        %v1059 = vld [vmem:[#allocation2 + $0xb0] sm:$0xff]
        %v1060 = vld [vmem:[#allocation2 + $0xb8] sm:$0xff]
        %v1061 = vld [vmem:[#allocation2 + $0xc0] sm:$0xff]
        %v1062 = vld [vmem:[#allocation2 + $0xc8] sm:$0xff]
        %v1063 = vld [vmem:[#allocation2 + $0xd0] sm:$0xff]
        %v1064 = vld [vmem:[#allocation2 + $0xd8] sm:$0xff]
        %v1065 = vld [vmem:[#allocation2 + $0xe0] sm:$0xff]
        %v1066 = vld [vmem:[#allocation2 + $0xe8] sm:$0xff]
        %v1067 = vld [vmem:[#allocation2 + $0xf0] sm:$0xff]
        %v1068 = vld [vmem:[#allocation2 + $0xf8] sm:$0xff]
        %v1069 = vld [vmem:[#allocation2 + $0x100] sm:$0xff]
        %v1070 = vld [vmem:[#allocation2 + $0x108] sm:$0xff]
        %v1071 = vld [vmem:[#allocation2 + $0x110] sm:$0xff]
        %v1072 = vld [vmem:[#allocation2 + $0x118] sm:$0xff]
        %v1073 = vld [vmem:[#allocation2 + $0x120] sm:$0xff]
        %v1074 = vld [vmem:[#allocation2 + $0x128] sm:$0xff]
        %v1075 = vld [vmem:[#allocation2 + $0x130] sm:$0xff]
        %v1076 = vld [vmem:[#allocation2 + $0x138] sm:$0xff]
        %v1077 = vld [vmem:[#allocation2 + $0x140] sm:$0xff]
        %v1078 = vld [vmem:[#allocation2 + $0x148] sm:$0xff]
        %v1079 = vld [vmem:[#allocation2 + $0x150] sm:$0xff]
        %v1080 = vld [vmem:[#allocation2 + $0x158] sm:$0xff]
        %v1081 = vld [vmem:[#allocation2 + $0x160] sm:$0xff]
        %v1082 = vld [vmem:[#allocation2 + $0x168] sm:$0xff]
        %v1083 = vld [vmem:[#allocation2 + $0x170] sm:$0xff]
        %v1084 = vld [vmem:[#allocation2 + $0x178] sm:$0xff]
        %v1085 = vld [vmem:[#allocation2 + $0x180] sm:$0xff]
        %v1086 = vld [vmem:[#allocation2 + $0x188] sm:$0xff]
        %v1087 = vld [vmem:[#allocation2 + $0x190] sm:$0xff]
        %v1088 = vld [vmem:[#allocation2 + $0x198] sm:$0xff]
        %v1089 = vld [vmem:[#allocation2 + $0x1a0] sm:$0xff]
        %v1090 = vld [vmem:[#allocation2 + $0x1a8] sm:$0xff]
        %v1091 = vld [vmem:[#allocation2 + $0x1b0] sm:$0xff]
        %v1092 = vld [vmem:[#allocation2 + $0x1b8] sm:$0xff]
        %v1093 = vld [vmem:[#allocation2 + $0x1c0] sm:$0xff]
        %v1094 = vld [vmem:[#allocation2 + $0x1c8] sm:$0xff]
        %v1095 = vld [vmem:[#allocation2 + $0x1d0] sm:$0xff]
        %v1096 = vld [vmem:[#allocation2 + $0x1d8] sm:$0xff]
        %v1097 = vld [vmem:[#allocation2 + $0x1e0] sm:$0xff]
        %v1098 = vld [vmem:[#allocation2 + $0x1e8] sm:$0xff]
        %v1099 = vld [vmem:[#allocation2 + $0x1f0] sm:$0xff]
        %v1100 = vld [vmem:[#allocation2 + $0x1f8] sm:$0xff]
        %v1101 = vld [vmem:[%s249] sm:$0x1]
        %v1103 = vperm.slane %v1101, 0
        %v1105 = vadd.f32 %v1037, %v1103
        %v1106 = vadd.f32 %v1038, %v1103
        %v1107 = vadd.f32 %v1039, %v1103
        %v1108 = vadd.f32 %v1040, %v1103
        %v1109 = vadd.f32 %v1041, %v1103
        %v1110 = vadd.f32 %v1042, %v1103
        %v1111 = vadd.f32 %v1043, %v1103
        %v1112 = vadd.f32 %v1044, %v1103
        %v1113 = vadd.f32 %v1045, %v1103
        %v1114 = vadd.f32 %v1046, %v1103
        %v1115 = vadd.f32 %v1047, %v1103
        %v1116 = vadd.f32 %v1048, %v1103
        %v1117 = vadd.f32 %v1049, %v1103
        %v1118 = vadd.f32 %v1050, %v1103
        %v1119 = vadd.f32 %v1051, %v1103
        %v1120 = vadd.f32 %v1052, %v1103
        %v1121 = vadd.f32 %v1053, %v1103
        %v1122 = vadd.f32 %v1054, %v1103
        %v1123 = vadd.f32 %v1055, %v1103
        %v1124 = vadd.f32 %v1056, %v1103
        %v1125 = vadd.f32 %v1057, %v1103
        %v1126 = vadd.f32 %v1058, %v1103
        %v1127 = vadd.f32 %v1059, %v1103
        %v1128 = vadd.f32 %v1060, %v1103
        %v1129 = vadd.f32 %v1061, %v1103
        %v1130 = vadd.f32 %v1062, %v1103
        %v1131 = vadd.f32 %v1063, %v1103
        %v1132 = vadd.f32 %v1064, %v1103
        %v1133 = vadd.f32 %v1065, %v1103
        %v1134 = vadd.f32 %v1066, %v1103
        %v1135 = vadd.f32 %v1067, %v1103
        %v1136 = vadd.f32 %v1068, %v1103
        %v1137 = vadd.f32 %v1069, %v1103
        %v1138 = vadd.f32 %v1070, %v1103
        %v1139 = vadd.f32 %v1071, %v1103
        %v1140 = vadd.f32 %v1072, %v1103
        %v1141 = vadd.f32 %v1073, %v1103
        %v1142 = vadd.f32 %v1074, %v1103
        %v1143 = vadd.f32 %v1075, %v1103
        %v1144 = vadd.f32 %v1076, %v1103
        %v1145 = vadd.f32 %v1077, %v1103
        %v1146 = vadd.f32 %v1078, %v1103
        %v1147 = vadd.f32 %v1079, %v1103
        %v1148 = vadd.f32 %v1080, %v1103
        %v1149 = vadd.f32 %v1081, %v1103
        %v1150 = vadd.f32 %v1082, %v1103
        %v1151 = vadd.f32 %v1083, %v1103
        %v1152 = vadd.f32 %v1084, %v1103
        %v1153 = vadd.f32 %v1085, %v1103
        %v1154 = vadd.f32 %v1086, %v1103
        %v1155 = vadd.f32 %v1087, %v1103
        %v1156 = vadd.f32 %v1088, %v1103
        %v1157 = vadd.f32 %v1089, %v1103
        %v1158 = vadd.f32 %v1090, %v1103
        %v1159 = vadd.f32 %v1091, %v1103
        %v1160 = vadd.f32 %v1092, %v1103
        %v1161 = vadd.f32 %v1093, %v1103
        %v1162 = vadd.f32 %v1094, %v1103
        %v1163 = vadd.f32 %v1095, %v1103
        %v1164 = vadd.f32 %v1096, %v1103
        %v1165 = vadd.f32 %v1097, %v1103
        %v1166 = vadd.f32 %v1098, %v1103
        %v1167 = vadd.f32 %v1099, %v1103
        %v1168 = vadd.f32 %v1100, %v1103
        %v1169 = vmax.f32 %v1105, 0.0
        %v1170 = vmax.f32 %v1106, 0.0
        %v1171 = vmax.f32 %v1107, 0.0
        %v1172 = vmax.f32 %v1108, 0.0
        %v1173 = vmax.f32 %v1109, 0.0
        %v1174 = vmax.f32 %v1110, 0.0
        %v1175 = vmax.f32 %v1111, 0.0
        %v1176 = vmax.f32 %v1112, 0.0
        %v1177 = vmax.f32 %v1113, 0.0
        %v1178 = vmax.f32 %v1114, 0.0
        %v1179 = vmax.f32 %v1115, 0.0
        %v1180 = vmax.f32 %v1116, 0.0
        %v1181 = vmax.f32 %v1117, 0.0
        %v1182 = vmax.f32 %v1118, 0.0
        %v1183 = vmax.f32 %v1119, 0.0
        %v1184 = vmax.f32 %v1120, 0.0
        %v1185 = vmax.f32 %v1121, 0.0
        %v1186 = vmax.f32 %v1122, 0.0
        %v1187 = vmax.f32 %v1123, 0.0
        %v1188 = vmax.f32 %v1124, 0.0
        %v1189 = vmax.f32 %v1125, 0.0
        %v1190 = vmax.f32 %v1126, 0.0
        %v1191 = vmax.f32 %v1127, 0.0
        %v1192 = vmax.f32 %v1128, 0.0
        %v1193 = vmax.f32 %v1129, 0.0
        %v1194 = vmax.f32 %v1130, 0.0
        %v1195 = vmax.f32 %v1131, 0.0
        %v1196 = vmax.f32 %v1132, 0.0
        %v1197 = vmax.f32 %v1133, 0.0
        %v1198 = vmax.f32 %v1134, 0.0
        %v1199 = vmax.f32 %v1135, 0.0
        %v1200 = vmax.f32 %v1136, 0.0
        %v1201 = vmax.f32 %v1137, 0.0
        %v1202 = vmax.f32 %v1138, 0.0
        %v1203 = vmax.f32 %v1139, 0.0
        %v1204 = vmax.f32 %v1140, 0.0
        %v1205 = vmax.f32 %v1141, 0.0
        %v1206 = vmax.f32 %v1142, 0.0
        %v1207 = vmax.f32 %v1143, 0.0
        %v1208 = vmax.f32 %v1144, 0.0
        %v1209 = vmax.f32 %v1145, 0.0
        %v1210 = vmax.f32 %v1146, 0.0
        %v1211 = vmax.f32 %v1147, 0.0
        %v1212 = vmax.f32 %v1148, 0.0
        %v1213 = vmax.f32 %v1149, 0.0
        %v1214 = vmax.f32 %v1150, 0.0
        %v1215 = vmax.f32 %v1151, 0.0
        %v1216 = vmax.f32 %v1152, 0.0
        %v1217 = vmax.f32 %v1153, 0.0
        %v1218 = vmax.f32 %v1154, 0.0
        %v1219 = vmax.f32 %v1155, 0.0
        %v1220 = vmax.f32 %v1156, 0.0
        %v1221 = vmax.f32 %v1157, 0.0
        %v1222 = vmax.f32 %v1158, 0.0
        %v1223 = vmax.f32 %v1159, 0.0
        %v1224 = vmax.f32 %v1160, 0.0
        %v1225 = vmax.f32 %v1161, 0.0
        %v1226 = vmax.f32 %v1162, 0.0
        %v1227 = vmax.f32 %v1163, 0.0
        %v1228 = vmax.f32 %v1164, 0.0
        %v1229 = vmax.f32 %v1165, 0.0
        %v1230 = vmax.f32 %v1166, 0.0
        %v1231 = vmax.f32 %v1167, 0.0
        %v1232 = vmax.f32 %v1168, 0.0
        %v1233 = vpack.c.bf16 %v1169, %v1169
        %v1234 = vpack.c.bf16 %v1170, %v1170
        %v1235 = vpack.c.bf16 %v1171, %v1171
        %v1236 = vpack.c.bf16 %v1172, %v1172
        %v1237 = vpack.c.bf16 %v1173, %v1173
        %v1238 = vpack.c.bf16 %v1174, %v1174
        %v1239 = vpack.c.bf16 %v1175, %v1175
        %v1240 = vpack.c.bf16 %v1176, %v1176
        %v1241 = vpack.c.bf16 %v1177, %v1177
        %v1242 = vpack.c.bf16 %v1178, %v1178
        %v1243 = vpack.c.bf16 %v1179, %v1179
        %v1244 = vpack.c.bf16 %v1180, %v1180
        %v1245 = vpack.c.bf16 %v1181, %v1181
        %v1246 = vpack.c.bf16 %v1182, %v1182
        %v1247 = vpack.c.bf16 %v1183, %v1183
        %v1248 = vpack.c.bf16 %v1184, %v1184
        %v1249 = vpack.c.bf16 %v1185, %v1185
        %v1250 = vpack.c.bf16 %v1186, %v1186
        %v1251 = vpack.c.bf16 %v1187, %v1187
        %v1252 = vpack.c.bf16 %v1188, %v1188
        %v1253 = vpack.c.bf16 %v1189, %v1189
        %v1254 = vpack.c.bf16 %v1190, %v1190
        %v1255 = vpack.c.bf16 %v1191, %v1191
        %v1256 = vpack.c.bf16 %v1192, %v1192
        %v1257 = vpack.c.bf16 %v1193, %v1193
        %v1258 = vpack.c.bf16 %v1194, %v1194
        %v1259 = vpack.c.bf16 %v1195, %v1195
        %v1260 = vpack.c.bf16 %v1196, %v1196
        %v1261 = vpack.c.bf16 %v1197, %v1197
        %v1262 = vpack.c.bf16 %v1198, %v1198
        %v1263 = vpack.c.bf16 %v1199, %v1199
        %v1264 = vpack.c.bf16 %v1200, %v1200
        %v1265 = vpack.c.bf16 %v1201, %v1201
        %v1266 = vpack.c.bf16 %v1202, %v1202
        %v1267 = vpack.c.bf16 %v1203, %v1203
        %v1268 = vpack.c.bf16 %v1204, %v1204
        %v1269 = vpack.c.bf16 %v1205, %v1205
        %v1270 = vpack.c.bf16 %v1206, %v1206
        %v1271 = vpack.c.bf16 %v1207, %v1207
        %v1272 = vpack.c.bf16 %v1208, %v1208
        %v1273 = vpack.c.bf16 %v1209, %v1209
        %v1274 = vpack.c.bf16 %v1210, %v1210
        %v1275 = vpack.c.bf16 %v1211, %v1211
        %v1276 = vpack.c.bf16 %v1212, %v1212
        %v1277 = vpack.c.bf16 %v1213, %v1213
        %v1278 = vpack.c.bf16 %v1214, %v1214
        %v1279 = vpack.c.bf16 %v1215, %v1215
        %v1280 = vpack.c.bf16 %v1216, %v1216
        %v1281 = vpack.c.bf16 %v1217, %v1217
        %v1282 = vpack.c.bf16 %v1218, %v1218
        %v1283 = vpack.c.bf16 %v1219, %v1219
        %v1284 = vpack.c.bf16 %v1220, %v1220
        %v1285 = vpack.c.bf16 %v1221, %v1221
        %v1286 = vpack.c.bf16 %v1222, %v1222
        %v1287 = vpack.c.bf16 %v1223, %v1223
        %v1288 = vpack.c.bf16 %v1224, %v1224
        %v1289 = vpack.c.bf16 %v1225, %v1225
        %v1290 = vpack.c.bf16 %v1226, %v1226
        %v1291 = vpack.c.bf16 %v1227, %v1227
        %v1292 = vpack.c.bf16 %v1228, %v1228
        %v1293 = vpack.c.bf16 %v1229, %v1229
        %v1294 = vpack.c.bf16 %v1230, %v1230
        %v1295 = vpack.c.bf16 %v1231, %v1231
        %v1296 = vpack.c.bf16 %v1232, %v1232
        %vm1297 = vcmask 519168
        %1298 = vst.msk [vmem:[%s257] sm:$0xf] %vm1297, %v1233
        %1299 = vst.msk [vmem:[%s257 + $0x4] sm:$0xf] %vm1297, %v1234
        %1300 = vst.msk [vmem:[%s257 + $0x8] sm:$0xf] %vm1297, %v1235
        %1301 = vst.msk [vmem:[%s257 + $0xc] sm:$0xf] %vm1297, %v1236
        %1302 = vst.msk [vmem:[%s257 + $0x10] sm:$0xf] %vm1297, %v1237
        %1303 = vst.msk [vmem:[%s257 + $0x14] sm:$0xf] %vm1297, %v1238
        %1304 = vst.msk [vmem:[%s257 + $0x18] sm:$0xf] %vm1297, %v1239
        %1305 = vst.msk [vmem:[%s257 + $0x1c] sm:$0xf] %vm1297, %v1240
        %1306 = vst.msk [vmem:[%s257 + $0x20] sm:$0xf] %vm1297, %v1241
        %1307 = vst.msk [vmem:[%s257 + $0x24] sm:$0xf] %vm1297, %v1242
        %1308 = vst.msk [vmem:[%s257 + $0x28] sm:$0xf] %vm1297, %v1243
        %1309 = vst.msk [vmem:[%s257 + $0x2c] sm:$0xf] %vm1297, %v1244
        %1310 = vst.msk [vmem:[%s257 + $0x30] sm:$0xf] %vm1297, %v1245
        %1311 = vst.msk [vmem:[%s257 + $0x34] sm:$0xf] %vm1297, %v1246
        %1312 = vst.msk [vmem:[%s257 + $0x38] sm:$0xf] %vm1297, %v1247
        %1313 = vst.msk [vmem:[%s257 + $0x3c] sm:$0xf] %vm1297, %v1248
        %1314 = vst.msk [vmem:[%s257 + $0x40] sm:$0xf] %vm1297, %v1249
        %1315 = vst.msk [vmem:[%s257 + $0x44] sm:$0xf] %vm1297, %v1250
        %1316 = vst.msk [vmem:[%s257 + $0x48] sm:$0xf] %vm1297, %v1251
        %1317 = vst.msk [vmem:[%s257 + $0x4c] sm:$0xf] %vm1297, %v1252
        %1318 = vst.msk [vmem:[%s257 + $0x50] sm:$0xf] %vm1297, %v1253
        %1319 = vst.msk [vmem:[%s257 + $0x54] sm:$0xf] %vm1297, %v1254
        %1320 = vst.msk [vmem:[%s257 + $0x58] sm:$0xf] %vm1297, %v1255
        %1321 = vst.msk [vmem:[%s257 + $0x5c] sm:$0xf] %vm1297, %v1256
        %1322 = vst.msk [vmem:[%s257 + $0x60] sm:$0xf] %vm1297, %v1257
        %1323 = vst.msk [vmem:[%s257 + $0x64] sm:$0xf] %vm1297, %v1258
        %1324 = vst.msk [vmem:[%s257 + $0x68] sm:$0xf] %vm1297, %v1259
        %1325 = vst.msk [vmem:[%s257 + $0x6c] sm:$0xf] %vm1297, %v1260
        %1326 = vst.msk [vmem:[%s257 + $0x70] sm:$0xf] %vm1297, %v1261
        %1327 = vst.msk [vmem:[%s257 + $0x74] sm:$0xf] %vm1297, %v1262
        %1328 = vst.msk [vmem:[%s257 + $0x78] sm:$0xf] %vm1297, %v1263
        %1329 = vst.msk [vmem:[%s257 + $0x7c] sm:$0xf] %vm1297, %v1264
        %1330 = vst.msk [vmem:[%s257 + $0x80] sm:$0xf] %vm1297, %v1265
        %1331 = vst.msk [vmem:[%s257 + $0x84] sm:$0xf] %vm1297, %v1266
        %1332 = vst.msk [vmem:[%s257 + $0x88] sm:$0xf] %vm1297, %v1267
        %1333 = vst.msk [vmem:[%s257 + $0x8c] sm:$0xf] %vm1297, %v1268
        %1334 = vst.msk [vmem:[%s257 + $0x90] sm:$0xf] %vm1297, %v1269
        %1335 = vst.msk [vmem:[%s257 + $0x94] sm:$0xf] %vm1297, %v1270
        %1336 = vst.msk [vmem:[%s257 + $0x98] sm:$0xf] %vm1297, %v1271
        %1337 = vst.msk [vmem:[%s257 + $0x9c] sm:$0xf] %vm1297, %v1272
        %1338 = vst.msk [vmem:[%s257 + $0xa0] sm:$0xf] %vm1297, %v1273
        %1339 = vst.msk [vmem:[%s257 + $0xa4] sm:$0xf] %vm1297, %v1274
        %1340 = vst.msk [vmem:[%s257 + $0xa8] sm:$0xf] %vm1297, %v1275
        %1341 = vst.msk [vmem:[%s257 + $0xac] sm:$0xf] %vm1297, %v1276
        %1342 = vst.msk [vmem:[%s257 + $0xb0] sm:$0xf] %vm1297, %v1277
        %1343 = vst.msk [vmem:[%s257 + $0xb4] sm:$0xf] %vm1297, %v1278
        %1344 = vst.msk [vmem:[%s257 + $0xb8] sm:$0xf] %vm1297, %v1279
        %1345 = vst.msk [vmem:[%s257 + $0xbc] sm:$0xf] %vm1297, %v1280
        %1346 = vst.msk [vmem:[%s257 + $0xc0] sm:$0xf] %vm1297, %v1281
        %1347 = vst.msk [vmem:[%s257 + $0xc4] sm:$0xf] %vm1297, %v1282
        %1348 = vst.msk [vmem:[%s257 + $0xc8] sm:$0xf] %vm1297, %v1283
        %1349 = vst.msk [vmem:[%s257 + $0xcc] sm:$0xf] %vm1297, %v1284
        %1350 = vst.msk [vmem:[%s257 + $0xd0] sm:$0xf] %vm1297, %v1285
        %1351 = vst.msk [vmem:[%s257 + $0xd4] sm:$0xf] %vm1297, %v1286
        %1352 = vst.msk [vmem:[%s257 + $0xd8] sm:$0xf] %vm1297, %v1287
        %1353 = vst.msk [vmem:[%s257 + $0xdc] sm:$0xf] %vm1297, %v1288
        %1354 = vst.msk [vmem:[%s257 + $0xe0] sm:$0xf] %vm1297, %v1289
        %1355 = vst.msk [vmem:[%s257 + $0xe4] sm:$0xf] %vm1297, %v1290
        %1356 = vst.msk [vmem:[%s257 + $0xe8] sm:$0xf] %vm1297, %v1291
        %1357 = vst.msk [vmem:[%s257 + $0xec] sm:$0xf] %vm1297, %v1292
        %1358 = vst.msk [vmem:[%s257 + $0xf0] sm:$0xf] %vm1297, %v1293
        %1359 = vst.msk [vmem:[%s257 + $0xf4] sm:$0xf] %vm1297, %v1294
        %1360 = vst.msk [vmem:[%s257 + $0xf8] sm:$0xf] %vm1297, %v1295
        %1361 = vst.msk [vmem:[%s257 + $0xfc] sm:$0xf] %vm1297, %v1296
      $region40: #{tpu_custom_call.1} parent=31 // pred_fallthru
        _
      %s1362 = smul.u32 64, %s19
      %p1363 = scmp.lt.s32.totalorder %s1362, 255
      %s1364 = scalar_select %p1363, %s1362, 255
      %p1365 = scmp.lt.s32.totalorder %s20, 0
      %s1366 = scalar_select %p1365, %s20, 0
      %s1367 = sadd.s32 %s1366, %s1364
      %s1368 = smul.addr %s1367, 4
      %s1369 = scalar_lea.vmem %s3, %s1368
      // Predicated region
      $region41: #{tpu_custom_call.1} parent=31 // pred_check
        %p1370 = pneg %p135
      $region42: #{tpu_custom_call.1} parent=31 // pred_check_branch
        %1372 = sbr.rel (%p1370) target = $region44
      $region43: #{tpu_custom_call.1} parent=31 // pred_region
        %s1373 = smul.u32 64, %s19
      $region44: #{tpu_custom_call.1} parent=31 // pred_fallthru
        _
    $region32: #{tpu_custom_call.1} parent=5 // pred_fallthru
      _
    %p1374 = scmp.le.s32.totalorder 2, %s9
    // Predicated region
    $region45: #{tpu_custom_call.1} parent=5 // pred_check
      %p1375 = pneg %p1374
    $region46: #{tpu_custom_call.1} parent=5 // pred_check_branch
      %1377 = sbr.rel (%p1375) target = $region48
    $region47: #{tpu_custom_call.1} parent=5 // pred_region
      %s1378 = ssub.s32 %s9, 2
      // Predicated region
      $region49: #{tpu_custom_call.1} parent=47 // pred_check
        %p1379 = pneg %p141
      $region50: #{tpu_custom_call.1} parent=47 // pred_check_branch
        %1381 = sbr.rel (%p1379) target = $region52
      $region51: #{tpu_custom_call.1} parent=47 // pred_region
        %s1382 = smul.u32 64, %s22
        %p1383 = scmp.lt.s32.totalorder %s1382, 255
        %s1384 = scalar_select %p1383, %s1382, 255
        %p1385 = scmp.lt.s32.totalorder %s23, 0
        %s1386 = scalar_select %p1385, %s23, 0
        %s1387 = sadd.s32 %s1386, %s1384
        %s1388 = smul.addr %s1387, 4
        %s1389 = scalar_lea.vmem %s3, %s1388
      $region52: #{tpu_custom_call.1} parent=47 // pred_fallthru
        _
    $region48: #{tpu_custom_call.1} parent=5 // pred_fallthru
      _
  $region6: #{tpu_custom_call.1} parent=0 // loop_footer
    %s13 = sadd.s32 1, %s9
  $region7: #{tpu_custom_call.1} parent=0 // loop_footer_branch
    %8 = sbr.rel target = $region3
  $region8: #{tpu_custom_call.1} parent=0 // loop_exit
    _

</llo_original>
